<compile_context>
chip_gen: v7x
topology: tpu7x:2x2x1
jax: 0.10.0
libtpu: 0.0.40
codegen_flags: <defaults>
</compile_context>

<pallas_src>
import math

import jax
import jax.numpy as jnp
from jax.experimental import pallas as pl
from jax.experimental.pallas import tpu as pltpu


def actor_kernel(xt_ref, w1t_ref, b1_ref, w2t_ref, b2_ref, w3t_ref, b3_ref,
                 ot_ref):
    # Feature-major: batch lives on the lane axis of every operand/result.
    # Layer 1: (H, S) @ (S, Tb) -> (H, Tb), f32 MXU accumulation.
    h1 = jnp.dot(w1t_ref[...], xt_ref[...], preferred_element_type=jnp.float32)
    # bf16 bias + relu (packed VALU on v6e/v7x); feeds next MXU as bf16.
    h1 = jnp.maximum(h1.astype(jnp.bfloat16) + b1_ref[...], 0.0)

    # Layer 2: (H, H) @ (H, Tb) -> (H, Tb).
    h2 = jnp.dot(w2t_ref[...], h1, preferred_element_type=jnp.float32)
    h2 = jnp.maximum(h2.astype(jnp.bfloat16) + b2_ref[...], 0.0)

    # Layer 3 (means half only, action dim padded to a sublane multiple):
    # (A_pad, H) @ (H, Tb) -> (A_pad, Tb); bias + tanh kept in f32.
    y = jnp.dot(w3t_ref[...], h2, preferred_element_type=jnp.float32)
    y = y + b3_ref[...]
    ot_ref[...] = jnp.tanh(y).astype(ot_ref.dtype)


def _round_up(n, m):
    return ((n + m - 1) // m) * m


def _choose_tile(batch, tile_b):
    """Pick (padded_batch, tile) for the lane (batch) axis."""
    small = _round_up(batch, 8)
    if small <= 256:
        # Tiny batch: one full-extent tile (no 128-lane divisibility needed).
        return small, small
    # Lane-aligned tiles (multiples of 256); ensure >=2 tiles for the two v7x
    # TensorCores on mid-sized batches; cap at 2048 so per-tile VMEM stays
    # within v5e's default scoped-VMEM limit.
    tile = _round_up(min(tile_b, batch), 256)
    half = _round_up((batch + 1) // 2, 256)
    tile = max(256, min(tile, half, 2048))
    padded = _round_up(batch, tile)
    return padded, tile


def prepare_actor_params(params):
    """One-time weight prep (hoisted out of the per-call path).

    Transposes to feature-major, casts MXU operands to bf16, slices the
    means-only half of layer 3, and pads the action dim to a multiple of 8.
    """
    w1, b1, w2, b2, w3, b3 = params
    state_dim, hidden = w1.shape
    action_dim = w3.shape[1] // 2
    a_pad = _round_up(action_dim, 8)

    w1t = w1.T.astype(jnp.bfloat16)                      # (H, S)
    w2t = w2.T.astype(jnp.bfloat16)                      # (H, H)
    w3t = jnp.pad(w3[:, :action_dim].T.astype(jnp.bfloat16),
                  ((0, a_pad - action_dim), (0, 0)))     # (A_pad, H)

    b1c = b1.reshape(hidden, 1).astype(jnp.bfloat16)     # (H, 1)
    b2c = b2.reshape(hidden, 1).astype(jnp.bfloat16)     # (H, 1)
    b3c = jnp.pad(b3[:, :action_dim].T.astype(jnp.float32),
                  ((0, a_pad - action_dim), (0, 0)))     # (A_pad, 1)

    return (w1t, b1c, w2t, b2c, w3t, b3c, action_dim)


def actor_forward(x, prepared, tile_b=2048):
    """x: [B, state_dim] float32 -> [B, action_dim] float32 (tanh means)."""
    w1t, b1c, w2t, b2c, w3t, b3c, action_dim = prepared
    batch, state_dim = x.shape
    assert state_dim == w1t.shape[1], "state_dim mismatch with prepared params"
    a_pad = w3t.shape[0]

    padded_b, tile = _choose_tile(batch, tile_b)
    n_tiles = padded_b // tile

    # Feature-major input: (S, padded_B), bf16 MXU operand.
    xt = x.astype(jnp.bfloat16).T
    if padded_b != batch:
        xt = jnp.pad(xt, ((0, 0), (0, padded_b - batch)))

    # Weights/biases keep a constant block index -> resident, no per-step DMA.
    resident = lambda a: pl.BlockSpec(a.shape, lambda i: (0, 0))

    out_t = pl.pallas_call(
        actor_kernel,
        out_shape=jax.ShapeDtypeStruct((a_pad, padded_b), jnp.float32),
        grid=(n_tiles,),
        in_specs=[
            pl.BlockSpec((state_dim, tile), lambda i: (0, i)),  # x^T tile
            resident(w1t), resident(b1c),
            resident(w2t), resident(b2c),
            resident(w3t), resident(b3c),
        ],
        out_specs=pl.BlockSpec((a_pad, tile), lambda i: (0, i)),
        compiler_params=pltpu.CompilerParams(
            dimension_semantics=("parallel",)),
    )(xt, w1t, b1c, w2t, b2c, w3t, b3c)

    # Drop action padding / batch padding, back to batch-major.
    return out_t[:action_dim, :batch].T


def init_actor_params(key, state_dim, action_dim, hidden=256):
    """PyTorch nn.Linear-style init (U[-1/sqrt(fan_in), 1/sqrt(fan_in)]).

    Weights are stored transposed vs torch: [in_features, out_features]."""
    ks = jax.random.split(key, 6)

    def linear(kw, kb, fan_in, fan_out):
        bound = 1.0 / math.sqrt(fan_in)
        w = jax.random.uniform(kw, (fan_in, fan_out), jnp.float32, -bound, bound)
        b = jax.random.uniform(kb, (1, fan_out), jnp.float32, -bound, bound)
        return w, b

    w1, b1 = linear(ks[0], ks[1], state_dim, hidden)
    w2, b2 = linear(ks[2], ks[3], hidden, hidden)
    w3, b3 = linear(ks[4], ks[5], hidden, 2 * action_dim)
    return (w1, b1, w2, b2, w3, b3)


def actor_forward_ref_f32(x, params):
    """Full-f32 reference (matches the PyTorch module)."""
    w1, b1, w2, b2, w3, b3 = params
    h1 = jnp.maximum(x @ w1 + b1, 0.0)
    h2 = jnp.maximum(h1 @ w2 + b2, 0.0)
    y = h2 @ w3 + b3
    action_dim = w3.shape[1] // 2
    return jnp.tanh(y[:, :action_dim])


def actor_forward_ref_bf16(x, params):
    """Precision-matched reference (bf16 MXU operands + bf16 bias/relu,
    f32 accumulation, f32 final bias+tanh) — mirrors the kernel math."""
    w1, b1, w2, b2, w3, b3 = params
    action_dim = w3.shape[1] // 2
    xb = x.astype(jnp.bfloat16)
    h1 = jnp.maximum(
        jnp.dot(xb, w1.astype(jnp.bfloat16),
                preferred_element_type=jnp.float32).astype(jnp.bfloat16)
        + b1.astype(jnp.bfloat16), 0.0)
    h2 = jnp.maximum(
        jnp.dot(h1, w2.astype(jnp.bfloat16),
                preferred_element_type=jnp.float32).astype(jnp.bfloat16)
        + b2.astype(jnp.bfloat16), 0.0)
    y = jnp.dot(h2, w3[:, :action_dim].astype(jnp.bfloat16),
                preferred_element_type=jnp.float32) + b3[:, :action_dim]
    return jnp.tanh(y)


if __name__ == "__main__":
    key = jax.random.PRNGKey(0)
    k_param, k_state = jax.random.split(key)

    batch, state_dim, action_dim = 2, 16, 4
    params = init_actor_params(k_param, state_dim, action_dim)
    prepared = prepare_actor_params(params)   # hoisted, done once at init
    state = jax.random.normal(k_state, (batch, state_dim), dtype=jnp.float32)

    out = actor_forward(state, prepared)
    out = jax.block_until_ready(out)
    assert out.shape == (batch, action_dim)

    # Precision-matched check (bf16 MXU operands + bf16 bias/relu, f32 acc);
    # tolerance is loose enough to absorb EUP-vs-XLA tanh approximation diffs.
    ref_bf16 = actor_forward_ref_bf16(state, params)
    assert jnp.allclose(out, ref_bf16, atol=1e-2, rtol=1e-2), \
        "mismatch vs precision-matched reference"

    # Sanity check vs the full-f32 PyTorch-equivalent reference (bf16 weights
    # are an intentional precision change vs the f32 torch module).
    ref_f32 = actor_forward_ref_f32(state, params)
    assert jnp.allclose(out, ref_f32, atol=5e-2, rtol=5e-2), \
        "mismatch vs f32 reference"

    print("KERNEL_OK")
</pallas_src>

<mosaic_0001>
module attributes {stable_mosaic.version = 11 : i64} {
  func.func @actor_kernel(%arg0: i32, %arg1: memref<16x8xbf16, #tpu.memory_space<vmem>>, %arg2: memref<256x16xbf16, #tpu.memory_space<vmem>>, %arg3: memref<256x1xbf16, #tpu.memory_space<vmem>>, %arg4: memref<256x256xbf16, #tpu.memory_space<vmem>>, %arg5: memref<256x1xbf16, #tpu.memory_space<vmem>>, %arg6: memref<8x256xbf16, #tpu.memory_space<vmem>>, %arg7: memref<8x1xf32, #tpu.memory_space<vmem>>, %arg8: memref<8x8xf32, #tpu.memory_space<vmem>>) attributes {dimension_semantics = [#tpu.dimension_semantics<parallel>], iteration_bounds = array<i64: 1>, scalar_prefetch = 0 : i64, scratch_operands = 0 : i64, tpu.core_type = #tpu.core_type<tc>, window_params = [{transform_indices = @transform_0, window_bounds = array<i64: 16, 8>}, {pipeline_mode = #tpu.pipeline_mode<synchronous>, transform_indices = @transform_1, window_bounds = array<i64: 256, 16>}, {pipeline_mode = #tpu.pipeline_mode<synchronous>, transform_indices = @transform_2, window_bounds = array<i64: 256, 1>}, {pipeline_mode = #tpu.pipeline_mode<synchronous>, transform_indices = @transform_3, window_bounds = array<i64: 256, 256>}, {pipeline_mode = #tpu.pipeline_mode<synchronous>, transform_indices = @transform_4, window_bounds = array<i64: 256, 1>}, {pipeline_mode = #tpu.pipeline_mode<synchronous>, transform_indices = @transform_5, window_bounds = array<i64: 8, 256>}, {pipeline_mode = #tpu.pipeline_mode<synchronous>, transform_indices = @transform_6, window_bounds = array<i64: 8, 1>}, {transform_indices = @transform_7, window_bounds = array<i64: 8, 8>}]} {
    %c0 = arith.constant 0 : index
    %c0_0 = arith.constant 0 : index
    %0 = vector.load %arg2[%c0, %c0_0] : memref<256x16xbf16, #tpu.memory_space<vmem>>, vector<256x16xbf16>
    %c0_1 = arith.constant 0 : index
    %c0_2 = arith.constant 0 : index
    %1 = vector.load %arg1[%c0_1, %c0_2] : memref<16x8xbf16, #tpu.memory_space<vmem>>, vector<16x8xbf16>
    %cst = arith.constant dense<0.000000e+00> : vector<256x8xf32>
    %2 = tpu.matmul %0, %1, %cst {dimension_numbers = #tpu.dot_dimension_numbers<[1], [0], [0], [1], [0, 0, 1, 1], [], []>} : vector<256x16xbf16>, vector<16x8xbf16>, vector<256x8xf32> -> vector<256x8xf32>
    %3 = arith.truncf %2 : vector<256x8xf32> to vector<256x8xbf16>
    %c0_3 = arith.constant 0 : index
    %c0_4 = arith.constant 0 : index
    %4 = vector.load %arg3[%c0_3, %c0_4] : memref<256x1xbf16, #tpu.memory_space<vmem>>, vector<256x1xbf16>
    %5 = vector.broadcast %4 : vector<256x1xbf16> to vector<256x8xbf16>
    %6 = arith.addf %3, %5 : vector<256x8xbf16>
    %cst_5 = arith.constant 0.000000e+00 : bf16
    %7 = vector.broadcast %cst_5 : bf16 to vector<256x8xbf16>
    %8 = arith.maximumf %6, %7 : vector<256x8xbf16>
    %c0_6 = arith.constant 0 : index
    %c0_7 = arith.constant 0 : index
    %9 = vector.load %arg4[%c0_6, %c0_7] : memref<256x256xbf16, #tpu.memory_space<vmem>>, vector<256x256xbf16>
    %cst_8 = arith.constant dense<0.000000e+00> : vector<256x8xf32>
    %10 = tpu.matmul %9, %8, %cst_8 {dimension_numbers = #tpu.dot_dimension_numbers<[1], [0], [0], [1], [0, 0, 1, 1], [], []>} : vector<256x256xbf16>, vector<256x8xbf16>, vector<256x8xf32> -> vector<256x8xf32>
    %11 = arith.truncf %10 : vector<256x8xf32> to vector<256x8xbf16>
    %c0_9 = arith.constant 0 : index
    %c0_10 = arith.constant 0 : index
    %12 = vector.load %arg5[%c0_9, %c0_10] : memref<256x1xbf16, #tpu.memory_space<vmem>>, vector<256x1xbf16>
    %13 = vector.broadcast %12 : vector<256x1xbf16> to vector<256x8xbf16>
    %14 = arith.addf %11, %13 : vector<256x8xbf16>
    %cst_11 = arith.constant 0.000000e+00 : bf16
    %15 = vector.broadcast %cst_11 : bf16 to vector<256x8xbf16>
    %16 = arith.maximumf %14, %15 : vector<256x8xbf16>
    %c0_12 = arith.constant 0 : index
    %c0_13 = arith.constant 0 : index
    %17 = vector.load %arg6[%c0_12, %c0_13] : memref<8x256xbf16, #tpu.memory_space<vmem>>, vector<8x256xbf16>
    %cst_14 = arith.constant dense<0.000000e+00> : vector<8x8xf32>
    %18 = tpu.matmul %17, %16, %cst_14 {dimension_numbers = #tpu.dot_dimension_numbers<[1], [0], [0], [1], [0, 0, 1, 1], [], []>} : vector<8x256xbf16>, vector<256x8xbf16>, vector<8x8xf32> -> vector<8x8xf32>
    %c0_15 = arith.constant 0 : index
    %c0_16 = arith.constant 0 : index
    %19 = vector.load %arg7[%c0_15, %c0_16] : memref<8x1xf32, #tpu.memory_space<vmem>>, vector<8x1xf32>
    %20 = vector.broadcast %19 : vector<8x1xf32> to vector<8x8xf32>
    %21 = arith.addf %18, %20 : vector<8x8xf32>
    %22 = math.tanh %21 : vector<8x8xf32>
    %c0_17 = arith.constant 0 : index
    %c0_18 = arith.constant 0 : index
    %23 = vector.load %arg8[%c0_17, %c0_18] : memref<8x8xf32, #tpu.memory_space<vmem>>, vector<8x8xf32>
    tpu.vector_store %arg8[%c0_17, %c0_18], %22 {strides = array<i32>} : memref<8x8xf32, #tpu.memory_space<vmem>>, vector<8x8xf32>,
    return
  }
  func.func @transform_0(%arg0: i32) -> (i32, i32) {
    %c0_i32 = arith.constant 0 : i32
    %c0_i32_0 = arith.constant 0 : i32
    return %c0_i32, %arg0 : i32, i32
  }
  func.func @transform_1(%arg0: i32) -> (i32, i32) {
    %c0_i32 = arith.constant 0 : i32
    %c0_i32_0 = arith.constant 0 : i32
    %c0_i32_1 = arith.constant 0 : i32
    return %c0_i32, %c0_i32_0 : i32, i32
  }
  func.func @transform_2(%arg0: i32) -> (i32, i32) {
    %c0_i32 = arith.constant 0 : i32
    %c0_i32_0 = arith.constant 0 : i32
    %c0_i32_1 = arith.constant 0 : i32
    return %c0_i32, %c0_i32_0 : i32, i32
  }
  func.func @transform_3(%arg0: i32) -> (i32, i32) {
    %c0_i32 = arith.constant 0 : i32
    %c0_i32_0 = arith.constant 0 : i32
    %c0_i32_1 = arith.constant 0 : i32
    return %c0_i32, %c0_i32_0 : i32, i32
  }
  func.func @transform_4(%arg0: i32) -> (i32, i32) {
    %c0_i32 = arith.constant 0 : i32
    %c0_i32_0 = arith.constant 0 : i32
    %c0_i32_1 = arith.constant 0 : i32
    return %c0_i32, %c0_i32_0 : i32, i32
  }
  func.func @transform_5(%arg0: i32) -> (i32, i32) {
    %c0_i32 = arith.constant 0 : i32
    %c0_i32_0 = arith.constant 0 : i32
    %c0_i32_1 = arith.constant 0 : i32
    return %c0_i32, %c0_i32_0 : i32, i32
  }
  func.func @transform_6(%arg0: i32) -> (i32, i32) {
    %c0_i32 = arith.constant 0 : i32
    %c0_i32_0 = arith.constant 0 : i32
    %c0_i32_1 = arith.constant 0 : i32
    return %c0_i32, %c0_i32_0 : i32, i32
  }
  func.func @transform_7(%arg0: i32) -> (i32, i32) {
    %c0_i32 = arith.constant 0 : i32
    %c0_i32_0 = arith.constant 0 : i32
    return %c0_i32, %arg0 : i32, i32
  }
}

</mosaic_0001>

<llo_original>
// kernel: tpu_custom_call.1
$region0: #{tpu_custom_call.1}
  #allocation0 [shape = 'u32[]', space=smem, size = 0x4, offset = 0x4, fixed_abs, tag = 'smem constant byte address 0x4 - core index']
  #allocation1 [shape = 'u32[144,128]{1,0:T(1,128)}', space=vmem, size = 0x12000, scoped, tag = 'internal scratch']
  %s0 = inlined_call_operand.vmem [shape: bf16[16,8], index: 0, kind: input, shape index: {}]
  %s1 = inlined_call_operand.vmem [shape: bf16[256,16], index: 1, kind: input, shape index: {}]
  %s2 = inlined_call_operand.vmem [shape: bf16[256,1], index: 2, kind: input, shape index: {}]
  %s3 = inlined_call_operand.vmem [shape: bf16[256,256], index: 3, kind: input, shape index: {}]
  %s4 = inlined_call_operand.vmem [shape: bf16[256,1], index: 4, kind: input, shape index: {}]
  %s5 = inlined_call_operand.vmem [shape: bf16[8,256], index: 5, kind: input, shape index: {}]
  %s6 = inlined_call_operand.vmem [shape: f32[8,1], index: 6, kind: input, shape index: {}]
  %s7 = inlined_call_operand.hbm [shape: f32[8,8], index: 7, kind: output, shape index: {}]
  %s8 = sld [smem:[#allocation0]]
  $region38: #{tpu_custom_call.1} parent=0
    _
  %s10 = ssub.s32 1, %s8
  %s11 = scalar_select 0, %s10, %s8
  $region1: #{tpu_custom_call.1} parent=0
    #allocation2 [shape = 'u8[4096]{0}', space=vmem, size = 0x1000, scoped, tag = 'output window, operand 0, single buffered']
    #allocation3 [shape = 's32[1]{0}', space=sflag, size = 0x4, scoped, tag = 'scoped memory for tpu_custom_call.1']
    %12 = vsyncpa [#allocation3], 0
    // Predicated region
    $region2: #{tpu_custom_call.1} parent=1 // pred_check
      _
    $region3: #{tpu_custom_call.1} parent=1 // pred_check_branch
      %14 = sbr.rel (0) target = $region5
    $region4: #{tpu_custom_call.1} parent=1 // pred_region
      _
    $region5: #{tpu_custom_call.1} parent=1 // pred_fallthru
      _
    // Predicated region
    $region6: #{tpu_custom_call.1} parent=1 // pred_check
      _
    $region7: #{tpu_custom_call.1} parent=1 // pred_check_branch
      %16 = sbr.rel (0) target = $region9
    $region8: #{tpu_custom_call.1} parent=1 // pred_region
      _
    $region9: #{tpu_custom_call.1} parent=1 // pred_fallthru
      _
    // Predicated region
    $region10: #{tpu_custom_call.1} parent=1 // pred_check
      _
    $region11: #{tpu_custom_call.1} parent=1 // pred_check_branch
      %18 = sbr.rel (0) target = $region13
    $region12: #{tpu_custom_call.1} parent=1 // pred_region
      _
    $region13: #{tpu_custom_call.1} parent=1 // pred_fallthru
      _
    // Predicated region
    $region14: #{tpu_custom_call.1} parent=1 // pred_check
      _
    $region15: #{tpu_custom_call.1} parent=1 // pred_check_branch
      %20 = sbr.rel (0) target = $region17
    $region16: #{tpu_custom_call.1} parent=1 // pred_region
      _
    $region17: #{tpu_custom_call.1} parent=1 // pred_fallthru
      _
    // Predicated region
    $region18: #{tpu_custom_call.1} parent=1 // pred_check
      _
    $region19: #{tpu_custom_call.1} parent=1 // pred_check_branch
      %22 = sbr.rel (0) target = $region21
    $region20: #{tpu_custom_call.1} parent=1 // pred_region
      _
    $region21: #{tpu_custom_call.1} parent=1 // pred_fallthru
      _
    // Predicated region
    $region22: #{tpu_custom_call.1} parent=1 // pred_check
      _
    $region23: #{tpu_custom_call.1} parent=1 // pred_check_branch
      %24 = sbr.rel (0) target = $region25
    $region24: #{tpu_custom_call.1} parent=1 // pred_region
      _
    $region25: #{tpu_custom_call.1} parent=1 // pred_fallthru
      _
    // Predicated region
    $region26: #{tpu_custom_call.1} parent=1 // pred_check
      _
    $region27: #{tpu_custom_call.1} parent=1 // pred_check_branch
      %26 = sbr.rel (0) target = $region29
    $region28: #{tpu_custom_call.1} parent=1 // pred_region
      _
    $region29: #{tpu_custom_call.1} parent=1 // pred_fallthru
      _
    %v28 = vld [vmem:[%s1] sm:$0xf]
    %v29 = vld [vmem:[%s1 + $0x4] sm:$0xf]
    %v30 = vld [vmem:[%s1 + $0x8] sm:$0xf]
    %v31 = vld [vmem:[%s1 + $0xc] sm:$0xf]
    %v32 = vld [vmem:[%s1 + $0x10] sm:$0xf]
    %v33 = vld [vmem:[%s1 + $0x14] sm:$0xf]
    %v34 = vld [vmem:[%s1 + $0x18] sm:$0xf]
    %v35 = vld [vmem:[%s1 + $0x1c] sm:$0xf]
    %v36 = vld [vmem:[%s1 + $0x20] sm:$0xf]
    %v37 = vld [vmem:[%s1 + $0x24] sm:$0xf]
    %v38 = vld [vmem:[%s1 + $0x28] sm:$0xf]
    %v39 = vld [vmem:[%s1 + $0x2c] sm:$0xf]
    %v40 = vld [vmem:[%s1 + $0x30] sm:$0xf]
    %v41 = vld [vmem:[%s1 + $0x34] sm:$0xf]
    %v42 = vld [vmem:[%s1 + $0x38] sm:$0xf]
    %v43 = vld [vmem:[%s1 + $0x3c] sm:$0xf]
    %v44 = vld [vmem:[%s1 + $0x40] sm:$0xf]
    %v45 = vld [vmem:[%s1 + $0x44] sm:$0xf]
    %v46 = vld [vmem:[%s1 + $0x48] sm:$0xf]
    %v47 = vld [vmem:[%s1 + $0x4c] sm:$0xf]
    %v48 = vld [vmem:[%s1 + $0x50] sm:$0xf]
    %v49 = vld [vmem:[%s1 + $0x54] sm:$0xf]
    %v50 = vld [vmem:[%s1 + $0x58] sm:$0xf]
    %v51 = vld [vmem:[%s1 + $0x5c] sm:$0xf]
    %v52 = vld [vmem:[%s1 + $0x60] sm:$0xf]
    %v53 = vld [vmem:[%s1 + $0x64] sm:$0xf]
    %v54 = vld [vmem:[%s1 + $0x68] sm:$0xf]
    %v55 = vld [vmem:[%s1 + $0x6c] sm:$0xf]
    %v56 = vld [vmem:[%s1 + $0x70] sm:$0xf]
    %v57 = vld [vmem:[%s1 + $0x74] sm:$0xf]
    %v58 = vld [vmem:[%s1 + $0x78] sm:$0xf]
    %v59 = vld [vmem:[%s1 + $0x7c] sm:$0xf]
    %v60 = vld [vmem:[%s0] sm:$0xf]
    %v61 = vld [vmem:[%s0 + $0x4] sm:$0xf]
    %v94 = vunpack.c.l.b16 %v28
    %v95 = vunpack.c.l.b16 %v29
    %v96 = vunpack.c.l.b16 %v30
    %v97 = vunpack.c.l.b16 %v31
    %v98 = vunpack.c.l.b16 %v32
    %v99 = vunpack.c.l.b16 %v33
    %v100 = vunpack.c.l.b16 %v34
    %v101 = vunpack.c.l.b16 %v35
    %v102 = vunpack.c.l.b16 %v36
    %v103 = vunpack.c.l.b16 %v37
    %v104 = vunpack.c.l.b16 %v38
    %v105 = vunpack.c.l.b16 %v39
    %v106 = vunpack.c.l.b16 %v40
    %v107 = vunpack.c.l.b16 %v41
    %v108 = vunpack.c.l.b16 %v42
    %v109 = vunpack.c.l.b16 %v43
    %v110 = vunpack.c.l.b16 %v44
    %v111 = vunpack.c.l.b16 %v45
    %v112 = vunpack.c.l.b16 %v46
    %v113 = vunpack.c.l.b16 %v47
    %v114 = vunpack.c.l.b16 %v48
    %v115 = vunpack.c.l.b16 %v49
    %v116 = vunpack.c.l.b16 %v50
    %v117 = vunpack.c.l.b16 %v51
    %v118 = vunpack.c.l.b16 %v52
    %v119 = vunpack.c.l.b16 %v53
    %v120 = vunpack.c.l.b16 %v54
    %v121 = vunpack.c.l.b16 %v55
    %v122 = vunpack.c.l.b16 %v56
    %v123 = vunpack.c.l.b16 %v57
    %v124 = vunpack.c.l.b16 %v58
    %v125 = vunpack.c.l.b16 %v59
    %v126 = vpack.c.b16 %v95, %v94
    %v127 = vpack.c.b16 %v97, %v96
    %v128 = vpack.c.b16 %v99, %v98
    %v129 = vpack.c.b16 %v101, %v100
    %v130 = vpack.c.b16 %v103, %v102
    %v131 = vpack.c.b16 %v105, %v104
    %v132 = vpack.c.b16 %v107, %v106
    %v133 = vpack.c.b16 %v109, %v108
    %v134 = vpack.c.b16 %v111, %v110
    %v135 = vpack.c.b16 %v113, %v112
    %v136 = vpack.c.b16 %v115, %v114
    %v137 = vpack.c.b16 %v117, %v116
    %v138 = vpack.c.b16 %v119, %v118
    %v139 = vpack.c.b16 %v121, %v120
    %v140 = vpack.c.b16 %v123, %v122
    %v141 = vpack.c.b16 %v125, %v124
    %v144 = vunpack.c.l.b16 %v60
    %v145 = vunpack.c.l.b16 %v61
    %v146 = vpack.c.b16 %v145, %v144
    %vm148 = vcmask 130048
    %v150 = vsel %vm148, %v126, 0
    %v153 = vsel %vm148, %v127, 0
    %v156 = vsel %vm148, %v128, 0
    %v159 = vsel %vm148, %v129, 0
    %v162 = vsel %vm148, %v130, 0
    %v165 = vsel %vm148, %v131, 0
    %v168 = vsel %vm148, %v132, 0
    %v171 = vsel %vm148, %v133, 0
    %v174 = vsel %vm148, %v134, 0
    %v177 = vsel %vm148, %v135, 0
    %v180 = vsel %vm148, %v136, 0
    %v183 = vsel %vm148, %v137, 0
    %v186 = vsel %vm148, %v138, 0
    %v189 = vsel %vm148, %v139, 0
    %v192 = vsel %vm148, %v140, 0
    %v195 = vsel %vm148, %v141, 0
    %197 = vmatprep.subr.bf16.mxu0 0
    %198 = vmatpush1.bf16.msra.mxu0 %v146
    %199 = vmatprep.subr.bf16.mxu0 0
    %200 = vmatpush1.bf16.msra.mxu0 0
    %201 = vmatprep.subr.bf16.mxu0 0
    %202 = vmatpush1.bf16.msra.mxu0 0
    %203 = vmatprep.subr.bf16.mxu0 0
    %204 = vmatpush1.bf16.msra.mxu0 0
    %205 = vmatprep.subr.bf16.mxu0 0
    %206 = vmatpush1.bf16.msra.mxu0 0
    %207 = vmatprep.subr.bf16.mxu0 0
    %208 = vmatpush1.bf16.msra.mxu0 0
    %209 = vmatprep.subr.bf16.mxu0 0
    %210 = vmatpush1.bf16.msra.mxu0 0
    %211 = vmatprep.subr.bf16.mxu0 0
    %212 = vmatpush1.bf16.msra.mxu0 0
    %213 = vmatprep.subr.bf16.mxu0 0
    %214 = vmatpush1.bf16.msra.mxu0 0
    %215 = vmatprep.subr.bf16.mxu0 0
    %216 = vmatpush1.bf16.msra.mxu0 0
    %217 = vmatprep.subr.bf16.mxu0 0
    %218 = vmatpush1.bf16.msra.mxu0 0
    %219 = vmatprep.subr.bf16.mxu0 0
    %220 = vmatpush1.bf16.msra.mxu0 0
    %221 = vmatprep.subr.bf16.mxu0 0
    %222 = vmatpush1.bf16.msra.mxu0 0
    %223 = vmatprep.subr.bf16.mxu0 0
    %224 = vmatpush1.bf16.msra.mxu0 0
    %225 = vmatprep.subr.bf16.mxu0 0
    %226 = vmatpush1.bf16.msra.mxu0 0
    %227 = vmatprep.subr.bf16.mxu0 0
    %228 = vmatpush1.bf16.msra.mxu0 0
    %229 = vmatprep.mubr.bf16.mxu0 0
    %230 = vmatmul.mubr.bf16.gmra.mrb[0].mxu0 %v150
    %v231 = vpop.f32.mrb[0].mxu0
    %v232 = vadd.f32 0.0, %v231
    %v233 = vpop.f32.mrb[0].mxu0
    %v234 = vpop.f32.mrb[0].mxu0
    %v235 = vadd.f32 0.0, %v234
    %v236 = vpop.f32.mrb[0].mxu0
    %237 = vmatprep.mubr.bf16.mxu0 0
    %238 = vmatmul.mubr.bf16.gmra.mrb[0].mxu0 %v153
    %v239 = vpop.f32.mrb[0].mxu0
    %v240 = vadd.f32 0.0, %v239
    %v241 = vpop.f32.mrb[0].mxu0
    %v242 = vpop.f32.mrb[0].mxu0
    %v243 = vadd.f32 0.0, %v242
    %v244 = vpop.f32.mrb[0].mxu0
    %245 = vmatprep.mubr.bf16.mxu0 0
    %246 = vmatmul.mubr.bf16.gmra.mrb[0].mxu0 %v156
    %v247 = vpop.f32.mrb[0].mxu0
    %v248 = vadd.f32 0.0, %v247
    %v249 = vpop.f32.mrb[0].mxu0
    %v250 = vpop.f32.mrb[0].mxu0
    %v251 = vadd.f32 0.0, %v250
    %v252 = vpop.f32.mrb[0].mxu0
    %253 = vmatprep.mubr.bf16.mxu0 0
    %254 = vmatmul.mubr.bf16.gmra.mrb[0].mxu0 %v159
    %v255 = vpop.f32.mrb[0].mxu0
    %v256 = vadd.f32 0.0, %v255
    %v257 = vpop.f32.mrb[0].mxu0
    %v258 = vpop.f32.mrb[0].mxu0
    %v259 = vadd.f32 0.0, %v258
    %v260 = vpop.f32.mrb[0].mxu0
    %261 = vmatprep.mubr.bf16.mxu0 0
    %262 = vmatmul.mubr.bf16.gmra.mrb[0].mxu0 %v162
    %v263 = vpop.f32.mrb[0].mxu0
    %v264 = vadd.f32 0.0, %v263
    %v265 = vpop.f32.mrb[0].mxu0
    %v266 = vpop.f32.mrb[0].mxu0
    %v267 = vadd.f32 0.0, %v266
    %v268 = vpop.f32.mrb[0].mxu0
    %269 = vmatprep.mubr.bf16.mxu0 0
    %270 = vmatmul.mubr.bf16.gmra.mrb[0].mxu0 %v165
    %v271 = vpop.f32.mrb[0].mxu0
    %v272 = vadd.f32 0.0, %v271
    %v273 = vpop.f32.mrb[0].mxu0
    %v274 = vpop.f32.mrb[0].mxu0
    %v275 = vadd.f32 0.0, %v274
    %v276 = vpop.f32.mrb[0].mxu0
    %277 = vmatprep.mubr.bf16.mxu0 0
    %278 = vmatmul.mubr.bf16.gmra.mrb[0].mxu0 %v168
    %v279 = vpop.f32.mrb[0].mxu0
    %v280 = vadd.f32 0.0, %v279
    %v281 = vpop.f32.mrb[0].mxu0
    %v282 = vpop.f32.mrb[0].mxu0
    %v283 = vadd.f32 0.0, %v282
    %v284 = vpop.f32.mrb[0].mxu0
    %285 = vmatprep.mubr.bf16.mxu0 0
    %286 = vmatmul.mubr.bf16.gmra.mrb[0].mxu0 %v171
    %v287 = vpop.f32.mrb[0].mxu0
    %v288 = vadd.f32 0.0, %v287
    %v289 = vpop.f32.mrb[0].mxu0
    %v290 = vpop.f32.mrb[0].mxu0
    %v291 = vadd.f32 0.0, %v290
    %v292 = vpop.f32.mrb[0].mxu0
    %293 = vmatprep.mubr.bf16.mxu0 0
    %294 = vmatmul.mubr.bf16.gmra.mrb[0].mxu0 %v174
    %v295 = vpop.f32.mrb[0].mxu0
    %v296 = vadd.f32 0.0, %v295
    %v297 = vpop.f32.mrb[0].mxu0
    %v298 = vpop.f32.mrb[0].mxu0
    %v299 = vadd.f32 0.0, %v298
    %v300 = vpop.f32.mrb[0].mxu0
    %301 = vmatprep.mubr.bf16.mxu0 0
    %302 = vmatmul.mubr.bf16.gmra.mrb[0].mxu0 %v177
    %v303 = vpop.f32.mrb[0].mxu0
    %v304 = vadd.f32 0.0, %v303
    %v305 = vpop.f32.mrb[0].mxu0
    %v306 = vpop.f32.mrb[0].mxu0
    %v307 = vadd.f32 0.0, %v306
    %v308 = vpop.f32.mrb[0].mxu0
    %309 = vmatprep.mubr.bf16.mxu0 0
    %310 = vmatmul.mubr.bf16.gmra.mrb[0].mxu0 %v180
    %v311 = vpop.f32.mrb[0].mxu0
    %v312 = vadd.f32 0.0, %v311
    %v313 = vpop.f32.mrb[0].mxu0
    %v314 = vpop.f32.mrb[0].mxu0
    %v315 = vadd.f32 0.0, %v314
    %v316 = vpop.f32.mrb[0].mxu0
    %317 = vmatprep.mubr.bf16.mxu0 0
    %318 = vmatmul.mubr.bf16.gmra.mrb[0].mxu0 %v183
    %v319 = vpop.f32.mrb[0].mxu0
    %v320 = vadd.f32 0.0, %v319
    %v321 = vpop.f32.mrb[0].mxu0
    %v322 = vpop.f32.mrb[0].mxu0
    %v323 = vadd.f32 0.0, %v322
    %v324 = vpop.f32.mrb[0].mxu0
    %325 = vmatprep.mubr.bf16.mxu0 0
    %326 = vmatmul.mubr.bf16.gmra.mrb[0].mxu0 %v186
    %v327 = vpop.f32.mrb[0].mxu0
    %v328 = vadd.f32 0.0, %v327
    %v329 = vpop.f32.mrb[0].mxu0
    %v330 = vpop.f32.mrb[0].mxu0
    %v331 = vadd.f32 0.0, %v330
    %v332 = vpop.f32.mrb[0].mxu0
    %333 = vmatprep.mubr.bf16.mxu0 0
    %334 = vmatmul.mubr.bf16.gmra.mrb[0].mxu0 %v189
    %v335 = vpop.f32.mrb[0].mxu0
    %v336 = vadd.f32 0.0, %v335
    %v337 = vpop.f32.mrb[0].mxu0
    %v338 = vpop.f32.mrb[0].mxu0
    %v339 = vadd.f32 0.0, %v338
    %v340 = vpop.f32.mrb[0].mxu0
    %341 = vmatprep.mubr.bf16.mxu0 0
    %342 = vmatmul.mubr.bf16.gmra.mrb[0].mxu0 %v192
    %v343 = vpop.f32.mrb[0].mxu0
    %v344 = vadd.f32 0.0, %v343
    %v345 = vpop.f32.mrb[0].mxu0
    %v346 = vpop.f32.mrb[0].mxu0
    %v347 = vadd.f32 0.0, %v346
    %v348 = vpop.f32.mrb[0].mxu0
    %349 = vmatprep.mubr.bf16.mxu0 0
    %350 = vmatmul.mubr.bf16.gmra.mrb[0].mxu0 %v195
    %v351 = vpop.f32.mrb[0].mxu0
    %v352 = vadd.f32 0.0, %v351
    %v353 = vpop.f32.mrb[0].mxu0
    %v354 = vpop.f32.mrb[0].mxu0
    %v355 = vadd.f32 0.0, %v354
    %v356 = vpop.f32.mrb[0].mxu0
    %357 = vdwg.mxu0
    %v358 = vpack.c.bf16 %v235, %v232
    %v359 = vpack.c.bf16 %v243, %v240
    %v360 = vpack.c.bf16 %v251, %v248
    %v361 = vpack.c.bf16 %v259, %v256
    %v362 = vpack.c.bf16 %v267, %v264
    %v363 = vpack.c.bf16 %v275, %v272
    %v364 = vpack.c.bf16 %v283, %v280
    %v365 = vpack.c.bf16 %v291, %v288
    %v366 = vpack.c.bf16 %v299, %v296
    %v367 = vpack.c.bf16 %v307, %v304
    %v368 = vpack.c.bf16 %v315, %v312
    %v369 = vpack.c.bf16 %v323, %v320
    %v370 = vpack.c.bf16 %v331, %v328
    %v371 = vpack.c.bf16 %v339, %v336
    %v372 = vpack.c.bf16 %v347, %v344
    %v373 = vpack.c.bf16 %v355, %v352
    %v374 = vld [vmem:[%s2] sm:$0xf]
    %v375 = vld [vmem:[%s2 + $0x4] sm:$0xf]
    %v376 = vld [vmem:[%s2 + $0x8] sm:$0xf]
    %v377 = vld [vmem:[%s2 + $0xc] sm:$0xf]
    %v378 = vld [vmem:[%s2 + $0x10] sm:$0xf]
    %v379 = vld [vmem:[%s2 + $0x14] sm:$0xf]
    %v380 = vld [vmem:[%s2 + $0x18] sm:$0xf]
    %v381 = vld [vmem:[%s2 + $0x1c] sm:$0xf]
    %v382 = vld [vmem:[%s2 + $0x20] sm:$0xf]
    %v383 = vld [vmem:[%s2 + $0x24] sm:$0xf]
    %v384 = vld [vmem:[%s2 + $0x28] sm:$0xf]
    %v385 = vld [vmem:[%s2 + $0x2c] sm:$0xf]
    %v386 = vld [vmem:[%s2 + $0x30] sm:$0xf]
    %v387 = vld [vmem:[%s2 + $0x34] sm:$0xf]
    %v388 = vld [vmem:[%s2 + $0x38] sm:$0xf]
    %v389 = vld [vmem:[%s2 + $0x3c] sm:$0xf]
    %v390 = vld [vmem:[%s2 + $0x40] sm:$0xf]
    %v391 = vld [vmem:[%s2 + $0x44] sm:$0xf]
    %v392 = vld [vmem:[%s2 + $0x48] sm:$0xf]
    %v393 = vld [vmem:[%s2 + $0x4c] sm:$0xf]
    %v394 = vld [vmem:[%s2 + $0x50] sm:$0xf]
    %v395 = vld [vmem:[%s2 + $0x54] sm:$0xf]
    %v396 = vld [vmem:[%s2 + $0x58] sm:$0xf]
    %v397 = vld [vmem:[%s2 + $0x5c] sm:$0xf]
    %v398 = vld [vmem:[%s2 + $0x60] sm:$0xf]
    %v399 = vld [vmem:[%s2 + $0x64] sm:$0xf]
    %v400 = vld [vmem:[%s2 + $0x68] sm:$0xf]
    %v401 = vld [vmem:[%s2 + $0x6c] sm:$0xf]
    %v402 = vld [vmem:[%s2 + $0x70] sm:$0xf]
    %v403 = vld [vmem:[%s2 + $0x74] sm:$0xf]
    %v404 = vld [vmem:[%s2 + $0x78] sm:$0xf]
    %v405 = vld [vmem:[%s2 + $0x7c] sm:$0xf]
    %407 = vset.pattern.permute.xlu0 0
    %408 = vperm.xlu0 %407, %v374
    %v409 = vpop.permute.xlu0 %408
    %v412 = vunpack.c.l.s4 839922192
    %v413 = vunpack.c.0.s8 %v412
    %v414 = vlaneseq
    %v415 = vshrl.u32 %v414, 7
    %v416 = vsub.s32 %v413, %v415
    %v417 = vrot.slane %v409, %v416
    %419 = vset.pattern.permute.xlu0 0
    %420 = vperm.xlu0 %419, %v375
    %v421 = vpop.permute.xlu0 %420
    %v424 = vunpack.c.l.s4 839922192
    %v425 = vunpack.c.0.s8 %v424
    %v426 = vlaneseq
    %v427 = vshrl.u32 %v426, 7
    %v428 = vsub.s32 %v425, %v427
    %v429 = vrot.slane %v421, %v428
    %431 = vset.pattern.permute.xlu0 0
    %432 = vperm.xlu0 %431, %v376
    %v433 = vpop.permute.xlu0 %432
    %v436 = vunpack.c.l.s4 839922192
    %v437 = vunpack.c.0.s8 %v436
    %v438 = vlaneseq
    %v439 = vshrl.u32 %v438, 7
    %v440 = vsub.s32 %v437, %v439
    %v441 = vrot.slane %v433, %v440
    %443 = vset.pattern.permute.xlu0 0
    %444 = vperm.xlu0 %443, %v377
    %v445 = vpop.permute.xlu0 %444
    %v448 = vunpack.c.l.s4 839922192
    %v449 = vunpack.c.0.s8 %v448
    %v450 = vlaneseq
    %v451 = vshrl.u32 %v450, 7
    %v452 = vsub.s32 %v449, %v451
    %v453 = vrot.slane %v445, %v452
    %455 = vset.pattern.permute.xlu0 0
    %456 = vperm.xlu0 %455, %v378
    %v457 = vpop.permute.xlu0 %456
    %v460 = vunpack.c.l.s4 839922192
    %v461 = vunpack.c.0.s8 %v460
    %v462 = vlaneseq
    %v463 = vshrl.u32 %v462, 7
    %v464 = vsub.s32 %v461, %v463
    %v465 = vrot.slane %v457, %v464
    %467 = vset.pattern.permute.xlu0 0
    %468 = vperm.xlu0 %467, %v379
    %v469 = vpop.permute.xlu0 %468
    %v472 = vunpack.c.l.s4 839922192
    %v473 = vunpack.c.0.s8 %v472
    %v474 = vlaneseq
    %v475 = vshrl.u32 %v474, 7
    %v476 = vsub.s32 %v473, %v475
    %v477 = vrot.slane %v469, %v476
    %479 = vset.pattern.permute.xlu0 0
    %480 = vperm.xlu0 %479, %v380
    %v481 = vpop.permute.xlu0 %480
    %v484 = vunpack.c.l.s4 839922192
    %v485 = vunpack.c.0.s8 %v484
    %v486 = vlaneseq
    %v487 = vshrl.u32 %v486, 7
    %v488 = vsub.s32 %v485, %v487
    %v489 = vrot.slane %v481, %v488
    %491 = vset.pattern.permute.xlu0 0
    %492 = vperm.xlu0 %491, %v381
    %v493 = vpop.permute.xlu0 %492
    %v496 = vunpack.c.l.s4 839922192
    %v497 = vunpack.c.0.s8 %v496
    %v498 = vlaneseq
    %v499 = vshrl.u32 %v498, 7
    %v500 = vsub.s32 %v497, %v499
    %v501 = vrot.slane %v493, %v500
    %503 = vset.pattern.permute.xlu0 0
    %504 = vperm.xlu0 %503, %v382
    %v505 = vpop.permute.xlu0 %504
    %v508 = vunpack.c.l.s4 839922192
    %v509 = vunpack.c.0.s8 %v508
    %v510 = vlaneseq
    %v511 = vshrl.u32 %v510, 7
    %v512 = vsub.s32 %v509, %v511
    %v513 = vrot.slane %v505, %v512
    %515 = vset.pattern.permute.xlu0 0
    %516 = vperm.xlu0 %515, %v383
    %v517 = vpop.permute.xlu0 %516
    %v520 = vunpack.c.l.s4 839922192
    %v521 = vunpack.c.0.s8 %v520
    %v522 = vlaneseq
    %v523 = vshrl.u32 %v522, 7
    %v524 = vsub.s32 %v521, %v523
    %v525 = vrot.slane %v517, %v524
    %527 = vset.pattern.permute.xlu0 0
    %528 = vperm.xlu0 %527, %v384
    %v529 = vpop.permute.xlu0 %528
    %v532 = vunpack.c.l.s4 839922192
    %v533 = vunpack.c.0.s8 %v532
    %v534 = vlaneseq
    %v535 = vshrl.u32 %v534, 7
    %v536 = vsub.s32 %v533, %v535
    %v537 = vrot.slane %v529, %v536
    %539 = vset.pattern.permute.xlu0 0
    %540 = vperm.xlu0 %539, %v385
    %v541 = vpop.permute.xlu0 %540
    %v544 = vunpack.c.l.s4 839922192
    %v545 = vunpack.c.0.s8 %v544
    %v546 = vlaneseq
    %v547 = vshrl.u32 %v546, 7
    %v548 = vsub.s32 %v545, %v547
    %v549 = vrot.slane %v541, %v548
    %551 = vset.pattern.permute.xlu0 0
    %552 = vperm.xlu0 %551, %v386
    %v553 = vpop.permute.xlu0 %552
    %v556 = vunpack.c.l.s4 839922192
    %v557 = vunpack.c.0.s8 %v556
    %v558 = vlaneseq
    %v559 = vshrl.u32 %v558, 7
    %v560 = vsub.s32 %v557, %v559
    %v561 = vrot.slane %v553, %v560
    %563 = vset.pattern.permute.xlu0 0
    %564 = vperm.xlu0 %563, %v387
    %v565 = vpop.permute.xlu0 %564
    %v568 = vunpack.c.l.s4 839922192
    %v569 = vunpack.c.0.s8 %v568
    %v570 = vlaneseq
    %v571 = vshrl.u32 %v570, 7
    %v572 = vsub.s32 %v569, %v571
    %v573 = vrot.slane %v565, %v572
    %575 = vset.pattern.permute.xlu0 0
    %576 = vperm.xlu0 %575, %v388
    %v577 = vpop.permute.xlu0 %576
    %v580 = vunpack.c.l.s4 839922192
    %v581 = vunpack.c.0.s8 %v580
    %v582 = vlaneseq
    %v583 = vshrl.u32 %v582, 7
    %v584 = vsub.s32 %v581, %v583
    %v585 = vrot.slane %v577, %v584
    %587 = vset.pattern.permute.xlu0 0
    %588 = vperm.xlu0 %587, %v389
    %v589 = vpop.permute.xlu0 %588
    %v592 = vunpack.c.l.s4 839922192
    %v593 = vunpack.c.0.s8 %v592
    %v594 = vlaneseq
    %v595 = vshrl.u32 %v594, 7
    %v596 = vsub.s32 %v593, %v595
    %v597 = vrot.slane %v589, %v596
    %599 = vset.pattern.permute.xlu0 0
    %600 = vperm.xlu0 %599, %v390
    %v601 = vpop.permute.xlu0 %600
    %v604 = vunpack.c.l.s4 839922192
    %v605 = vunpack.c.0.s8 %v604
    %v606 = vlaneseq
    %v607 = vshrl.u32 %v606, 7
    %v608 = vsub.s32 %v605, %v607
    %v609 = vrot.slane %v601, %v608
    %611 = vset.pattern.permute.xlu0 0
    %612 = vperm.xlu0 %611, %v391
    %v613 = vpop.permute.xlu0 %612
    %v616 = vunpack.c.l.s4 839922192
    %v617 = vunpack.c.0.s8 %v616
    %v618 = vlaneseq
    %v619 = vshrl.u32 %v618, 7
    %v620 = vsub.s32 %v617, %v619
    %v621 = vrot.slane %v613, %v620
    %623 = vset.pattern.permute.xlu0 0
    %624 = vperm.xlu0 %623, %v392
    %v625 = vpop.permute.xlu0 %624
    %v628 = vunpack.c.l.s4 839922192
    %v629 = vunpack.c.0.s8 %v628
    %v630 = vlaneseq
    %v631 = vshrl.u32 %v630, 7
    %v632 = vsub.s32 %v629, %v631
    %v633 = vrot.slane %v625, %v632
    %635 = vset.pattern.permute.xlu0 0
    %636 = vperm.xlu0 %635, %v393
    %v637 = vpop.permute.xlu0 %636
    %v640 = vunpack.c.l.s4 839922192
    %v641 = vunpack.c.0.s8 %v640
    %v642 = vlaneseq
    %v643 = vshrl.u32 %v642, 7
    %v644 = vsub.s32 %v641, %v643
    %v645 = vrot.slane %v637, %v644
    %647 = vset.pattern.permute.xlu0 0
    %648 = vperm.xlu0 %647, %v394
    %v649 = vpop.permute.xlu0 %648
    %v652 = vunpack.c.l.s4 839922192
    %v653 = vunpack.c.0.s8 %v652
    %v654 = vlaneseq
    %v655 = vshrl.u32 %v654, 7
    %v656 = vsub.s32 %v653, %v655
    %v657 = vrot.slane %v649, %v656
    %659 = vset.pattern.permute.xlu0 0
    %660 = vperm.xlu0 %659, %v395
    %v661 = vpop.permute.xlu0 %660
    %v664 = vunpack.c.l.s4 839922192
    %v665 = vunpack.c.0.s8 %v664
    %v666 = vlaneseq
    %v667 = vshrl.u32 %v666, 7
    %v668 = vsub.s32 %v665, %v667
    %v669 = vrot.slane %v661, %v668
    %671 = vset.pattern.permute.xlu0 0
    %672 = vperm.xlu0 %671, %v396
    %v673 = vpop.permute.xlu0 %672
    %v676 = vunpack.c.l.s4 839922192
    %v677 = vunpack.c.0.s8 %v676
    %v678 = vlaneseq
    %v679 = vshrl.u32 %v678, 7
    %v680 = vsub.s32 %v677, %v679
    %v681 = vrot.slane %v673, %v680
    %683 = vset.pattern.permute.xlu0 0
    %684 = vperm.xlu0 %683, %v397
    %v685 = vpop.permute.xlu0 %684
    %v688 = vunpack.c.l.s4 839922192
    %v689 = vunpack.c.0.s8 %v688
    %v690 = vlaneseq
    %v691 = vshrl.u32 %v690, 7
    %v692 = vsub.s32 %v689, %v691
    %v693 = vrot.slane %v685, %v692
    %695 = vset.pattern.permute.xlu0 0
    %696 = vperm.xlu0 %695, %v398
    %v697 = vpop.permute.xlu0 %696
    %v700 = vunpack.c.l.s4 839922192
    %v701 = vunpack.c.0.s8 %v700
    %v702 = vlaneseq
    %v703 = vshrl.u32 %v702, 7
    %v704 = vsub.s32 %v701, %v703
    %v705 = vrot.slane %v697, %v704
    %707 = vset.pattern.permute.xlu0 0
    %708 = vperm.xlu0 %707, %v399
    %v709 = vpop.permute.xlu0 %708
    %v712 = vunpack.c.l.s4 839922192
    %v713 = vunpack.c.0.s8 %v712
    %v714 = vlaneseq
    %v715 = vshrl.u32 %v714, 7
    %v716 = vsub.s32 %v713, %v715
    %v717 = vrot.slane %v709, %v716
    %719 = vset.pattern.permute.xlu0 0
    %720 = vperm.xlu0 %719, %v400
    %v721 = vpop.permute.xlu0 %720
    %v724 = vunpack.c.l.s4 839922192
    %v725 = vunpack.c.0.s8 %v724
    %v726 = vlaneseq
    %v727 = vshrl.u32 %v726, 7
    %v728 = vsub.s32 %v725, %v727
    %v729 = vrot.slane %v721, %v728
    %731 = vset.pattern.permute.xlu0 0
    %732 = vperm.xlu0 %731, %v401
    %v733 = vpop.permute.xlu0 %732
    %v736 = vunpack.c.l.s4 839922192
    %v737 = vunpack.c.0.s8 %v736
    %v738 = vlaneseq
    %v739 = vshrl.u32 %v738, 7
    %v740 = vsub.s32 %v737, %v739
    %v741 = vrot.slane %v733, %v740
    %743 = vset.pattern.permute.xlu0 0
    %744 = vperm.xlu0 %743, %v402
    %v745 = vpop.permute.xlu0 %744
    %v748 = vunpack.c.l.s4 839922192
    %v749 = vunpack.c.0.s8 %v748
    %v750 = vlaneseq
    %v751 = vshrl.u32 %v750, 7
    %v752 = vsub.s32 %v749, %v751
    %v753 = vrot.slane %v745, %v752
    %755 = vset.pattern.permute.xlu0 0
    %756 = vperm.xlu0 %755, %v403
    %v757 = vpop.permute.xlu0 %756
    %v760 = vunpack.c.l.s4 839922192
    %v761 = vunpack.c.0.s8 %v760
    %v762 = vlaneseq
    %v763 = vshrl.u32 %v762, 7
    %v764 = vsub.s32 %v761, %v763
    %v765 = vrot.slane %v757, %v764
    %767 = vset.pattern.permute.xlu0 0
    %768 = vperm.xlu0 %767, %v404
    %v769 = vpop.permute.xlu0 %768
    %v772 = vunpack.c.l.s4 839922192
    %v773 = vunpack.c.0.s8 %v772
    %v774 = vlaneseq
    %v775 = vshrl.u32 %v774, 7
    %v776 = vsub.s32 %v773, %v775
    %v777 = vrot.slane %v769, %v776
    %779 = vset.pattern.permute.xlu0 0
    %780 = vperm.xlu0 %779, %v405
    %v781 = vpop.permute.xlu0 %780
    %v784 = vunpack.c.l.s4 839922192
    %v785 = vunpack.c.0.s8 %v784
    %v786 = vlaneseq
    %v787 = vshrl.u32 %v786, 7
    %v788 = vsub.s32 %v785, %v787
    %v789 = vrot.slane %v781, %v788
    %v822 = vunpack.c.l.b16 %v417
    %v823 = vunpack.c.l.b16 %v429
    %v824 = vunpack.c.l.b16 %v441
    %v825 = vunpack.c.l.b16 %v453
    %v826 = vunpack.c.l.b16 %v465
    %v827 = vunpack.c.l.b16 %v477
    %v828 = vunpack.c.l.b16 %v489
    %v829 = vunpack.c.l.b16 %v501
    %v830 = vunpack.c.l.b16 %v513
    %v831 = vunpack.c.l.b16 %v525
    %v832 = vunpack.c.l.b16 %v537
    %v833 = vunpack.c.l.b16 %v549
    %v834 = vunpack.c.l.b16 %v561
    %v835 = vunpack.c.l.b16 %v573
    %v836 = vunpack.c.l.b16 %v585
    %v837 = vunpack.c.l.b16 %v597
    %v838 = vunpack.c.l.b16 %v609
    %v839 = vunpack.c.l.b16 %v621
    %v840 = vunpack.c.l.b16 %v633
    %v841 = vunpack.c.l.b16 %v645
    %v842 = vunpack.c.l.b16 %v657
    %v843 = vunpack.c.l.b16 %v669
    %v844 = vunpack.c.l.b16 %v681
    %v845 = vunpack.c.l.b16 %v693
    %v846 = vunpack.c.l.b16 %v705
    %v847 = vunpack.c.l.b16 %v717
    %v848 = vunpack.c.l.b16 %v729
    %v849 = vunpack.c.l.b16 %v741
    %v850 = vunpack.c.l.b16 %v753
    %v851 = vunpack.c.l.b16 %v765
    %v852 = vunpack.c.l.b16 %v777
    %v853 = vunpack.c.l.b16 %v789
    %v854 = vpack.c.b16 %v823, %v822
    %v855 = vpack.c.b16 %v825, %v824
    %v856 = vpack.c.b16 %v827, %v826
    %v857 = vpack.c.b16 %v829, %v828
    %v858 = vpack.c.b16 %v831, %v830
    %v859 = vpack.c.b16 %v833, %v832
    %v860 = vpack.c.b16 %v835, %v834
    %v861 = vpack.c.b16 %v837, %v836
    %v862 = vpack.c.b16 %v839, %v838
    %v863 = vpack.c.b16 %v841, %v840
    %v864 = vpack.c.b16 %v843, %v842
    %v865 = vpack.c.b16 %v845, %v844
    %v866 = vpack.c.b16 %v847, %v846
    %v867 = vpack.c.b16 %v849, %v848
    %v868 = vpack.c.b16 %v851, %v850
    %v869 = vpack.c.b16 %v853, %v852
    %v886 = vadd.bf16 %v358, %v854
    %v887 = vadd.bf16 %v359, %v855
    %v888 = vadd.bf16 %v360, %v856
    %v889 = vadd.bf16 %v361, %v857
    %v890 = vadd.bf16 %v362, %v858
    %v891 = vadd.bf16 %v363, %v859
    %v892 = vadd.bf16 %v364, %v860
    %v893 = vadd.bf16 %v365, %v861
    %v894 = vadd.bf16 %v366, %v862
    %v895 = vadd.bf16 %v367, %v863
    %v896 = vadd.bf16 %v368, %v864
    %v897 = vadd.bf16 %v369, %v865
    %v898 = vadd.bf16 %v370, %v866
    %v899 = vadd.bf16 %v371, %v867
    %v900 = vadd.bf16 %v372, %v868
    %v901 = vadd.bf16 %v373, %v869
    %v902 = vmax.bf16 %v886, 0
    %v903 = vmax.bf16 %v887, 0
    %v904 = vmax.bf16 %v888, 0
    %v905 = vmax.bf16 %v889, 0
    %v906 = vmax.bf16 %v890, 0
    %v907 = vmax.bf16 %v891, 0
    %v908 = vmax.bf16 %v892, 0
    %v909 = vmax.bf16 %v893, 0
    %v910 = vmax.bf16 %v894, 0
    %v911 = vmax.bf16 %v895, 0
    %v912 = vmax.bf16 %v896, 0
    %v913 = vmax.bf16 %v897, 0
    %v914 = vmax.bf16 %v898, 0
    %v915 = vmax.bf16 %v899, 0
    %v916 = vmax.bf16 %v900, 0
    %v917 = vmax.bf16 %v901, 0
    %v918 = vld [vmem:[%s3] sm:$0xff]
    %v919 = vld [vmem:[%s3 + $0x8] sm:$0xff]
    %v920 = vld [vmem:[%s3 + $0x10] sm:$0xff]
    %v921 = vld [vmem:[%s3 + $0x18] sm:$0xff]
    %v922 = vld [vmem:[%s3 + $0x20] sm:$0xff]
    %v923 = vld [vmem:[%s3 + $0x28] sm:$0xff]
    %v924 = vld [vmem:[%s3 + $0x30] sm:$0xff]
    %v925 = vld [vmem:[%s3 + $0x38] sm:$0xff]
    %v926 = vld [vmem:[%s3 + $0x40] sm:$0xff]
    %v927 = vld [vmem:[%s3 + $0x48] sm:$0xff]
    %v928 = vld [vmem:[%s3 + $0x50] sm:$0xff]
    %v929 = vld [vmem:[%s3 + $0x58] sm:$0xff]
    %v930 = vld [vmem:[%s3 + $0x60] sm:$0xff]
    %v931 = vld [vmem:[%s3 + $0x68] sm:$0xff]
    %v932 = vld [vmem:[%s3 + $0x70] sm:$0xff]
    %v933 = vld [vmem:[%s3 + $0x78] sm:$0xff]
    %v934 = vld [vmem:[%s3 + $0x80] sm:$0xff]
    %v935 = vld [vmem:[%s3 + $0x88] sm:$0xff]
    %v936 = vld [vmem:[%s3 + $0x90] sm:$0xff]
    %v937 = vld [vmem:[%s3 + $0x98] sm:$0xff]
    %v938 = vld [vmem:[%s3 + $0xa0] sm:$0xff]
    %v939 = vld [vmem:[%s3 + $0xa8] sm:$0xff]
    %v940 = vld [vmem:[%s3 + $0xb0] sm:$0xff]
    %v941 = vld [vmem:[%s3 + $0xb8] sm:$0xff]
    %v942 = vld [vmem:[%s3 + $0xc0] sm:$0xff]
    %v943 = vld [vmem:[%s3 + $0xc8] sm:$0xff]
    %v944 = vld [vmem:[%s3 + $0xd0] sm:$0xff]
    %v945 = vld [vmem:[%s3 + $0xd8] sm:$0xff]
    %v946 = vld [vmem:[%s3 + $0xe0] sm:$0xff]
    %v947 = vld [vmem:[%s3 + $0xe8] sm:$0xff]
    %v948 = vld [vmem:[%s3 + $0xf0] sm:$0xff]
    %v949 = vld [vmem:[%s3 + $0xf8] sm:$0xff]
    %v982 = vunpack.c.l.b16 %v918
    %v983 = vunpack.c.h.b16 %v918
    %v984 = vunpack.c.l.b16 %v919
    %v985 = vunpack.c.h.b16 %v919
    %v986 = vunpack.c.l.b16 %v920
    %v987 = vunpack.c.h.b16 %v920
    %v988 = vunpack.c.l.b16 %v921
    %v989 = vunpack.c.h.b16 %v921
    %v990 = vunpack.c.l.b16 %v922
    %v991 = vunpack.c.h.b16 %v922
    %v992 = vunpack.c.l.b16 %v923
    %v993 = vunpack.c.h.b16 %v923
    %v994 = vunpack.c.l.b16 %v924
    %v995 = vunpack.c.h.b16 %v924
    %v996 = vunpack.c.l.b16 %v925
    %v997 = vunpack.c.h.b16 %v925
    %v998 = vunpack.c.l.b16 %v926
    %v999 = vunpack.c.h.b16 %v926
    %v1000 = vunpack.c.l.b16 %v927
    %v1001 = vunpack.c.h.b16 %v927
    %v1002 = vunpack.c.l.b16 %v928
    %v1003 = vunpack.c.h.b16 %v928
    %v1004 = vunpack.c.l.b16 %v929
    %v1005 = vunpack.c.h.b16 %v929
    %v1006 = vunpack.c.l.b16 %v930
    %v1007 = vunpack.c.h.b16 %v930
    %v1008 = vunpack.c.l.b16 %v931
    %v1009 = vunpack.c.h.b16 %v931
    %v1010 = vunpack.c.l.b16 %v932
    %v1011 = vunpack.c.h.b16 %v932
    %v1012 = vunpack.c.l.b16 %v933
    %v1013 = vunpack.c.h.b16 %v933
    %v1014 = vunpack.c.l.b16 %v934
    %v1015 = vunpack.c.h.b16 %v934
    %v1016 = vunpack.c.l.b16 %v935
    %v1017 = vunpack.c.h.b16 %v935
    %v1018 = vunpack.c.l.b16 %v936
    %v1019 = vunpack.c.h.b16 %v936
    %v1020 = vunpack.c.l.b16 %v937
    %v1021 = vunpack.c.h.b16 %v937
    %v1022 = vunpack.c.l.b16 %v938
    %v1023 = vunpack.c.h.b16 %v938
    %v1024 = vunpack.c.l.b16 %v939
    %v1025 = vunpack.c.h.b16 %v939
    %v1026 = vunpack.c.l.b16 %v940
    %v1027 = vunpack.c.h.b16 %v940
    %v1028 = vunpack.c.l.b16 %v941
    %v1029 = vunpack.c.h.b16 %v941
    %v1030 = vunpack.c.l.b16 %v942
    %v1031 = vunpack.c.h.b16 %v942
    %v1032 = vunpack.c.l.b16 %v943
    %v1033 = vunpack.c.h.b16 %v943
    %v1034 = vunpack.c.l.b16 %v944
    %v1035 = vunpack.c.h.b16 %v944
    %v1036 = vunpack.c.l.b16 %v945
    %v1037 = vunpack.c.h.b16 %v945
    %v1038 = vunpack.c.l.b16 %v946
    %v1039 = vunpack.c.h.b16 %v946
    %v1040 = vunpack.c.l.b16 %v947
    %v1041 = vunpack.c.h.b16 %v947
    %v1042 = vunpack.c.l.b16 %v948
    %v1043 = vunpack.c.h.b16 %v948
    %v1044 = vunpack.c.l.b16 %v949
    %v1045 = vunpack.c.h.b16 %v949
    %v1046 = vpack.c.b16 %v984, %v982
    %v1047 = vpack.c.b16 %v985, %v983
    %v1048 = vpack.c.b16 %v988, %v986
    %v1049 = vpack.c.b16 %v989, %v987
    %v1050 = vpack.c.b16 %v992, %v990
    %v1051 = vpack.c.b16 %v993, %v991
    %v1052 = vpack.c.b16 %v996, %v994
    %v1053 = vpack.c.b16 %v997, %v995
    %v1054 = vpack.c.b16 %v1000, %v998
    %v1055 = vpack.c.b16 %v1001, %v999
    %v1056 = vpack.c.b16 %v1004, %v1002
    %v1057 = vpack.c.b16 %v1005, %v1003
    %v1058 = vpack.c.b16 %v1008, %v1006
    %v1059 = vpack.c.b16 %v1009, %v1007
    %v1060 = vpack.c.b16 %v1012, %v1010
    %v1061 = vpack.c.b16 %v1013, %v1011
    %v1062 = vpack.c.b16 %v1016, %v1014
    %v1063 = vpack.c.b16 %v1017, %v1015
    %v1064 = vpack.c.b16 %v1020, %v1018
    %v1065 = vpack.c.b16 %v1021, %v1019
    %v1066 = vpack.c.b16 %v1024, %v1022
    %v1067 = vpack.c.b16 %v1025, %v1023
    %v1068 = vpack.c.b16 %v1028, %v1026
    %v1069 = vpack.c.b16 %v1029, %v1027
    %v1070 = vpack.c.b16 %v1032, %v1030
    %v1071 = vpack.c.b16 %v1033, %v1031
    %v1072 = vpack.c.b16 %v1036, %v1034
    %v1073 = vpack.c.b16 %v1037, %v1035
    %v1074 = vpack.c.b16 %v1040, %v1038
    %v1075 = vpack.c.b16 %v1041, %v1039
    %v1076 = vpack.c.b16 %v1044, %v1042
    %v1077 = vpack.c.b16 %v1045, %v1043
    %1110 = vmatprep.subr.bf16.mxu0 0
    %1111 = vmatpush1.bf16.msra.mxu0 %v902
    %1112 = vmatprep.subr.bf16.mxu0 0
    %1113 = vmatpush1.bf16.msra.mxu0 %v903
    %1114 = vmatprep.subr.bf16.mxu0 0
    %1115 = vmatpush1.bf16.msra.mxu0 %v904
    %1116 = vmatprep.subr.bf16.mxu0 0
    %1117 = vmatpush1.bf16.msra.mxu0 %v905
    %1118 = vmatprep.subr.bf16.mxu0 0
    %1119 = vmatpush1.bf16.msra.mxu0 %v906
    %1120 = vmatprep.subr.bf16.mxu0 0
    %1121 = vmatpush1.bf16.msra.mxu0 %v907
    %1122 = vmatprep.subr.bf16.mxu0 0
    %1123 = vmatpush1.bf16.msra.mxu0 %v908
    %1124 = vmatprep.subr.bf16.mxu0 0
    %1125 = vmatpush1.bf16.msra.mxu0 %v909
    %1126 = vmatprep.subr.bf16.mxu0 0
    %1127 = vmatpush1.bf16.msra.mxu0 %v910
    %1128 = vmatprep.subr.bf16.mxu0 0
    %1129 = vmatpush1.bf16.msra.mxu0 %v911
    %1130 = vmatprep.subr.bf16.mxu0 0
    %1131 = vmatpush1.bf16.msra.mxu0 %v912
    %1132 = vmatprep.subr.bf16.mxu0 0
    %1133 = vmatpush1.bf16.msra.mxu0 %v913
    %1134 = vmatprep.subr.bf16.mxu0 0
    %1135 = vmatpush1.bf16.msra.mxu0 %v914
    %1136 = vmatprep.subr.bf16.mxu0 0
    %1137 = vmatpush1.bf16.msra.mxu0 %v915
    %1138 = vmatprep.subr.bf16.mxu0 0
    %1139 = vmatpush1.bf16.msra.mxu0 %v916
    %1140 = vmatprep.subr.bf16.mxu0 0
    %1141 = vmatpush1.bf16.msra.mxu0 %v917
    %1142 = vmatprep.mubr.bf16.mxu0 %v1047
    %1143 = vmatmul.mubr.bf16.gmra.mrb[0].mxu0 %v1046
    %v1144 = vpop.f32.mrb[0].mxu0
    %v1145 = vadd.f32 0.0, %v1144
    %v1146 = vpop.f32.mrb[0].mxu0
    %v1147 = vpop.f32.mrb[0].mxu0
    %v1148 = vadd.f32 0.0, %v1147
    %v1149 = vpop.f32.mrb[0].mxu0
    %1150 = vmatprep.mubr.bf16.mxu0 %v1049
    %1151 = vmatmul.mubr.bf16.gmra.mrb[0].mxu0 %v1048
    %v1152 = vpop.f32.mrb[0].mxu0
    %v1153 = vadd.f32 0.0, %v1152
    %v1154 = vpop.f32.mrb[0].mxu0
    %v1155 = vpop.f32.mrb[0].mxu0
    %v1156 = vadd.f32 0.0, %v1155
    %v1157 = vpop.f32.mrb[0].mxu0
    %1158 = vmatprep.mubr.bf16.mxu0 %v1051
    %1159 = vmatmul.mubr.bf16.gmra.mrb[0].mxu0 %v1050
    %v1160 = vpop.f32.mrb[0].mxu0
    %v1161 = vadd.f32 0.0, %v1160
    %v1162 = vpop.f32.mrb[0].mxu0
    %v1163 = vpop.f32.mrb[0].mxu0
    %v1164 = vadd.f32 0.0, %v1163
    %v1165 = vpop.f32.mrb[0].mxu0
    %1166 = vmatprep.mubr.bf16.mxu0 %v1053
    %1167 = vmatmul.mubr.bf16.gmra.mrb[0].mxu0 %v1052
    %v1168 = vpop.f32.mrb[0].mxu0
    %v1169 = vadd.f32 0.0, %v1168
    %v1170 = vpop.f32.mrb[0].mxu0
    %v1171 = vpop.f32.mrb[0].mxu0
    %v1172 = vadd.f32 0.0, %v1171
    %v1173 = vpop.f32.mrb[0].mxu0
    %1174 = vmatprep.mubr.bf16.mxu0 %v1055
    %1175 = vmatmul.mubr.bf16.gmra.mrb[0].mxu0 %v1054
    %v1176 = vpop.f32.mrb[0].mxu0
    %v1177 = vadd.f32 0.0, %v1176
    %v1178 = vpop.f32.mrb[0].mxu0
    %v1179 = vpop.f32.mrb[0].mxu0
    %v1180 = vadd.f32 0.0, %v1179
    %v1181 = vpop.f32.mrb[0].mxu0
    %1182 = vmatprep.mubr.bf16.mxu0 %v1057
    %1183 = vmatmul.mubr.bf16.gmra.mrb[0].mxu0 %v1056
    %v1184 = vpop.f32.mrb[0].mxu0
    %v1185 = vadd.f32 0.0, %v1184
    %v1186 = vpop.f32.mrb[0].mxu0
    %v1187 = vpop.f32.mrb[0].mxu0
    %v1188 = vadd.f32 0.0, %v1187
    %v1189 = vpop.f32.mrb[0].mxu0
    %1190 = vmatprep.mubr.bf16.mxu0 %v1059
    %1191 = vmatmul.mubr.bf16.gmra.mrb[0].mxu0 %v1058
    %v1192 = vpop.f32.mrb[0].mxu0
    %v1193 = vadd.f32 0.0, %v1192
    %v1194 = vpop.f32.mrb[0].mxu0
    %v1195 = vpop.f32.mrb[0].mxu0
    %v1196 = vadd.f32 0.0, %v1195
    %v1197 = vpop.f32.mrb[0].mxu0
    %1198 = vmatprep.mubr.bf16.mxu0 %v1061
    %1199 = vmatmul.mubr.bf16.gmra.mrb[0].mxu0 %v1060
    %v1200 = vpop.f32.mrb[0].mxu0
    %v1201 = vadd.f32 0.0, %v1200
    %v1202 = vpop.f32.mrb[0].mxu0
    %v1203 = vpop.f32.mrb[0].mxu0
    %v1204 = vadd.f32 0.0, %v1203
    %v1205 = vpop.f32.mrb[0].mxu0
    %1206 = vmatprep.mubr.bf16.mxu0 %v1063
    %1207 = vmatmul.mubr.bf16.gmra.mrb[0].mxu0 %v1062
    %v1208 = vpop.f32.mrb[0].mxu0
    %v1209 = vadd.f32 0.0, %v1208
    %v1210 = vpop.f32.mrb[0].mxu0
    %v1211 = vpop.f32.mrb[0].mxu0
    %v1212 = vadd.f32 0.0, %v1211
    %v1213 = vpop.f32.mrb[0].mxu0
    %1214 = vmatprep.mubr.bf16.mxu0 %v1065
    %1215 = vmatmul.mubr.bf16.gmra.mrb[0].mxu0 %v1064
    %v1216 = vpop.f32.mrb[0].mxu0
    %v1217 = vadd.f32 0.0, %v1216
    %v1218 = vpop.f32.mrb[0].mxu0
    %v1219 = vpop.f32.mrb[0].mxu0
    %v1220 = vadd.f32 0.0, %v1219
    %v1221 = vpop.f32.mrb[0].mxu0
    %1222 = vmatprep.mubr.bf16.mxu0 %v1067
    %1223 = vmatmul.mubr.bf16.gmra.mrb[0].mxu0 %v1066
    %v1224 = vpop.f32.mrb[0].mxu0
    %v1225 = vadd.f32 0.0, %v1224
    %v1226 = vpop.f32.mrb[0].mxu0
    %v1227 = vpop.f32.mrb[0].mxu0
    %v1228 = vadd.f32 0.0, %v1227
    %v1229 = vpop.f32.mrb[0].mxu0
    %1230 = vmatprep.mubr.bf16.mxu0 %v1069
    %1231 = vmatmul.mubr.bf16.gmra.mrb[0].mxu0 %v1068
    %v1232 = vpop.f32.mrb[0].mxu0
    %v1233 = vadd.f32 0.0, %v1232
    %v1234 = vpop.f32.mrb[0].mxu0
    %v1235 = vpop.f32.mrb[0].mxu0
    %v1236 = vadd.f32 0.0, %v1235
    %v1237 = vpop.f32.mrb[0].mxu0
    %1238 = vmatprep.mubr.bf16.mxu0 %v1071
    %1239 = vmatmul.mubr.bf16.gmra.mrb[0].mxu0 %v1070
    %v1240 = vpop.f32.mrb[0].mxu0
    %v1241 = vadd.f32 0.0, %v1240
    %v1242 = vpop.f32.mrb[0].mxu0
    %v1243 = vpop.f32.mrb[0].mxu0
    %v1244 = vadd.f32 0.0, %v1243
    %v1245 = vpop.f32.mrb[0].mxu0
    %1246 = vmatprep.mubr.bf16.mxu0 %v1073
    %1247 = vmatmul.mubr.bf16.gmra.mrb[0].mxu0 %v1072
    %v1248 = vpop.f32.mrb[0].mxu0
    %v1249 = vadd.f32 0.0, %v1248
    %v1250 = vpop.f32.mrb[0].mxu0
    %v1251 = vpop.f32.mrb[0].mxu0
    %v1252 = vadd.f32 0.0, %v1251
    %v1253 = vpop.f32.mrb[0].mxu0
    %1254 = vmatprep.mubr.bf16.mxu0 %v1075
    %1255 = vmatmul.mubr.bf16.gmra.mrb[0].mxu0 %v1074
    %v1256 = vpop.f32.mrb[0].mxu0
    %v1257 = vadd.f32 0.0, %v1256
    %v1258 = vpop.f32.mrb[0].mxu0
    %v1259 = vpop.f32.mrb[0].mxu0
    %v1260 = vadd.f32 0.0, %v1259
    %v1261 = vpop.f32.mrb[0].mxu0
    %1262 = vmatprep.mubr.bf16.mxu0 %v1077
    %1263 = vmatmul.mubr.bf16.gmra.mrb[0].mxu0 %v1076
    %v1264 = vpop.f32.mrb[0].mxu0
    %v1265 = vadd.f32 0.0, %v1264
    %v1266 = vpop.f32.mrb[0].mxu0
    %v1267 = vpop.f32.mrb[0].mxu0
    %v1268 = vadd.f32 0.0, %v1267
    %v1269 = vpop.f32.mrb[0].mxu0
    %1270 = vdwg.mxu0
    %v1271 = vpack.c.bf16 %v1148, %v1145
    %v1272 = vpack.c.bf16 %v1156, %v1153
    %v1273 = vpack.c.bf16 %v1164, %v1161
    %v1274 = vpack.c.bf16 %v1172, %v1169
    %v1275 = vpack.c.bf16 %v1180, %v1177
    %v1276 = vpack.c.bf16 %v1188, %v1185
    %v1277 = vpack.c.bf16 %v1196, %v1193
    %v1278 = vpack.c.bf16 %v1204, %v1201
    %v1279 = vpack.c.bf16 %v1212, %v1209
    %v1280 = vpack.c.bf16 %v1220, %v1217
    %v1281 = vpack.c.bf16 %v1228, %v1225
    %v1282 = vpack.c.bf16 %v1236, %v1233
    %v1283 = vpack.c.bf16 %v1244, %v1241
    %v1284 = vpack.c.bf16 %v1252, %v1249
    %v1285 = vpack.c.bf16 %v1260, %v1257
    %v1286 = vpack.c.bf16 %v1268, %v1265
    %v1287 = vld [vmem:[%s4] sm:$0xf]
    %v1288 = vld [vmem:[%s4 + $0x4] sm:$0xf]
    %v1289 = vld [vmem:[%s4 + $0x8] sm:$0xf]
    %v1290 = vld [vmem:[%s4 + $0xc] sm:$0xf]
    %v1291 = vld [vmem:[%s4 + $0x10] sm:$0xf]
    %v1292 = vld [vmem:[%s4 + $0x14] sm:$0xf]
    %v1293 = vld [vmem:[%s4 + $0x18] sm:$0xf]
    %v1294 = vld [vmem:[%s4 + $0x1c] sm:$0xf]
    %v1295 = vld [vmem:[%s4 + $0x20] sm:$0xf]
    %v1296 = vld [vmem:[%s4 + $0x24] sm:$0xf]
    %v1297 = vld [vmem:[%s4 + $0x28] sm:$0xf]
    %v1298 = vld [vmem:[%s4 + $0x2c] sm:$0xf]
    %v1299 = vld [vmem:[%s4 + $0x30] sm:$0xf]
    %v1300 = vld [vmem:[%s4 + $0x34] sm:$0xf]
    %v1301 = vld [vmem:[%s4 + $0x38] sm:$0xf]
    %v1302 = vld [vmem:[%s4 + $0x3c] sm:$0xf]
    %v1303 = vld [vmem:[%s4 + $0x40] sm:$0xf]
    %v1304 = vld [vmem:[%s4 + $0x44] sm:$0xf]
    %v1305 = vld [vmem:[%s4 + $0x48] sm:$0xf]
    %v1306 = vld [vmem:[%s4 + $0x4c] sm:$0xf]
    %v1307 = vld [vmem:[%s4 + $0x50] sm:$0xf]
    %v1308 = vld [vmem:[%s4 + $0x54] sm:$0xf]
    %v1309 = vld [vmem:[%s4 + $0x58] sm:$0xf]
    %v1310 = vld [vmem:[%s4 + $0x5c] sm:$0xf]
    %v1311 = vld [vmem:[%s4 + $0x60] sm:$0xf]
    %v1312 = vld [vmem:[%s4 + $0x64] sm:$0xf]
    %v1313 = vld [vmem:[%s4 + $0x68] sm:$0xf]
    %v1314 = vld [vmem:[%s4 + $0x6c] sm:$0xf]
    %v1315 = vld [vmem:[%s4 + $0x70] sm:$0xf]
    %v1316 = vld [vmem:[%s4 + $0x74] sm:$0xf]
    %v1317 = vld [vmem:[%s4 + $0x78] sm:$0xf]
    %v1318 = vld [vmem:[%s4 + $0x7c] sm:$0xf]
    %1320 = vset.pattern.permute.xlu0 0
    %1321 = vperm.xlu0 %1320, %v1287
    %v1322 = vpop.permute.xlu0 %1321
    %v1325 = vunpack.c.l.s4 839922192
    %v1326 = vunpack.c.0.s8 %v1325
    %v1327 = vlaneseq
    %v1328 = vshrl.u32 %v1327, 7
    %v1329 = vsub.s32 %v1326, %v1328
    %v1330 = vrot.slane %v1322, %v1329
    %1332 = vset.pattern.permute.xlu0 0
    %1333 = vperm.xlu0 %1332, %v1288
    %v1334 = vpop.permute.xlu0 %1333
    %v1337 = vunpack.c.l.s4 839922192
    %v1338 = vunpack.c.0.s8 %v1337
    %v1339 = vlaneseq
    %v1340 = vshrl.u32 %v1339, 7
    %v1341 = vsub.s32 %v1338, %v1340
    %v1342 = vrot.slane %v1334, %v1341
    %1344 = vset.pattern.permute.xlu0 0
    %1345 = vperm.xlu0 %1344, %v1289
    %v1346 = vpop.permute.xlu0 %1345
    %v1349 = vunpack.c.l.s4 839922192
    %v1350 = vunpack.c.0.s8 %v1349
    %v1351 = vlaneseq
    %v1352 = vshrl.u32 %v1351, 7
    %v1353 = vsub.s32 %v1350, %v1352
    %v1354 = vrot.slane %v1346, %v1353
    %1356 = vset.pattern.permute.xlu0 0
    %1357 = vperm.xlu0 %1356, %v1290
    %v1358 = vpop.permute.xlu0 %1357
    %v1361 = vunpack.c.l.s4 839922192
    %v1362 = vunpack.c.0.s8 %v1361
    %v1363 = vlaneseq
    %v1364 = vshrl.u32 %v1363, 7
    %v1365 = vsub.s32 %v1362, %v1364
    %v1366 = vrot.slane %v1358, %v1365
    %1368 = vset.pattern.permute.xlu0 0
    %1369 = vperm.xlu0 %1368, %v1291
    %v1370 = vpop.permute.xlu0 %1369
    %v1373 = vunpack.c.l.s4 839922192
    %v1374 = vunpack.c.0.s8 %v1373
    %v1375 = vlaneseq
    %v1376 = vshrl.u32 %v1375, 7
    %v1377 = vsub.s32 %v1374, %v1376
    %v1378 = vrot.slane %v1370, %v1377
    %1380 = vset.pattern.permute.xlu0 0
    %1381 = vperm.xlu0 %1380, %v1292
    %v1382 = vpop.permute.xlu0 %1381
    %v1385 = vunpack.c.l.s4 839922192
    %v1386 = vunpack.c.0.s8 %v1385
    %v1387 = vlaneseq
    %v1388 = vshrl.u32 %v1387, 7
    %v1389 = vsub.s32 %v1386, %v1388
    %v1390 = vrot.slane %v1382, %v1389
    %1392 = vset.pattern.permute.xlu0 0
    %1393 = vperm.xlu0 %1392, %v1293
    %v1394 = vpop.permute.xlu0 %1393
    %v1397 = vunpack.c.l.s4 839922192
    %v1398 = vunpack.c.0.s8 %v1397
    %v1399 = vlaneseq
    %v1400 = vshrl.u32 %v1399, 7
    %v1401 = vsub.s32 %v1398, %v1400
    %v1402 = vrot.slane %v1394, %v1401
    %1404 = vset.pattern.permute.xlu0 0
    %1405 = vperm.xlu0 %1404, %v1294
    %v1406 = vpop.permute.xlu0 %1405
    %v1409 = vunpack.c.l.s4 839922192
    %v1410 = vunpack.c.0.s8 %v1409
    %v1411 = vlaneseq
    %v1412 = vshrl.u32 %v1411, 7
    %v1413 = vsub.s32 %v1410, %v1412
    %v1414 = vrot.slane %v1406, %v1413
    %1416 = vset.pattern.permute.xlu0 0
    %1417 = vperm.xlu0 %1416, %v1295
    %v1418 = vpop.permute.xlu0 %1417
    %v1421 = vunpack.c.l.s4 839922192
    %v1422 = vunpack.c.0.s8 %v1421
    %v1423 = vlaneseq
    %v1424 = vshrl.u32 %v1423, 7
    %v1425 = vsub.s32 %v1422, %v1424
    %v1426 = vrot.slane %v1418, %v1425
    %1428 = vset.pattern.permute.xlu0 0
    %1429 = vperm.xlu0 %1428, %v1296
    %v1430 = vpop.permute.xlu0 %1429
    %v1433 = vunpack.c.l.s4 839922192
    %v1434 = vunpack.c.0.s8 %v1433
    %v1435 = vlaneseq
    %v1436 = vshrl.u32 %v1435, 7
    %v1437 = vsub.s32 %v1434, %v1436
    %v1438 = vrot.slane %v1430, %v1437
    %1440 = vset.pattern.permute.xlu0 0
    %1441 = vperm.xlu0 %1440, %v1297
    %v1442 = vpop.permute.xlu0 %1441
    %v1445 = vunpack.c.l.s4 839922192
    %v1446 = vunpack.c.0.s8 %v1445
    %v1447 = vlaneseq
    %v1448 = vshrl.u32 %v1447, 7
    %v1449 = vsub.s32 %v1446, %v1448
    %v1450 = vrot.slane %v1442, %v1449
    %1452 = vset.pattern.permute.xlu0 0
    %1453 = vperm.xlu0 %1452, %v1298
    %v1454 = vpop.permute.xlu0 %1453
    %v1457 = vunpack.c.l.s4 839922192
    %v1458 = vunpack.c.0.s8 %v1457
    %v1459 = vlaneseq
    %v1460 = vshrl.u32 %v1459, 7
    %v1461 = vsub.s32 %v1458, %v1460
    %v1462 = vrot.slane %v1454, %v1461
    %1464 = vset.pattern.permute.xlu0 0
    %1465 = vperm.xlu0 %1464, %v1299
    %v1466 = vpop.permute.xlu0 %1465
    %v1469 = vunpack.c.l.s4 839922192
    %v1470 = vunpack.c.0.s8 %v1469
    %v1471 = vlaneseq
    %v1472 = vshrl.u32 %v1471, 7
    %v1473 = vsub.s32 %v1470, %v1472
    %v1474 = vrot.slane %v1466, %v1473
    %1476 = vset.pattern.permute.xlu0 0
    %1477 = vperm.xlu0 %1476, %v1300
    %v1478 = vpop.permute.xlu0 %1477
    %v1481 = vunpack.c.l.s4 839922192
    %v1482 = vunpack.c.0.s8 %v1481
    %v1483 = vlaneseq
    %v1484 = vshrl.u32 %v1483, 7
    %v1485 = vsub.s32 %v1482, %v1484
    %v1486 = vrot.slane %v1478, %v1485
    %1488 = vset.pattern.permute.xlu0 0
    %1489 = vperm.xlu0 %1488, %v1301
    %v1490 = vpop.permute.xlu0 %1489
    %v1493 = vunpack.c.l.s4 839922192
    %v1494 = vunpack.c.0.s8 %v1493
    %v1495 = vlaneseq
    %v1496 = vshrl.u32 %v1495, 7
    %v1497 = vsub.s32 %v1494, %v1496
    %v1498 = vrot.slane %v1490, %v1497
    %1500 = vset.pattern.permute.xlu0 0
    %1501 = vperm.xlu0 %1500, %v1302
    %v1502 = vpop.permute.xlu0 %1501
    %v1505 = vunpack.c.l.s4 839922192
    %v1506 = vunpack.c.0.s8 %v1505
    %v1507 = vlaneseq
    %v1508 = vshrl.u32 %v1507, 7
    %v1509 = vsub.s32 %v1506, %v1508
    %v1510 = vrot.slane %v1502, %v1509
    %1512 = vset.pattern.permute.xlu0 0
    %1513 = vperm.xlu0 %1512, %v1303
    %v1514 = vpop.permute.xlu0 %1513
    %v1517 = vunpack.c.l.s4 839922192
    %v1518 = vunpack.c.0.s8 %v1517
    %v1519 = vlaneseq
    %v1520 = vshrl.u32 %v1519, 7
    %v1521 = vsub.s32 %v1518, %v1520
    %v1522 = vrot.slane %v1514, %v1521
    %1524 = vset.pattern.permute.xlu0 0
    %1525 = vperm.xlu0 %1524, %v1304
    %v1526 = vpop.permute.xlu0 %1525
    %v1529 = vunpack.c.l.s4 839922192
    %v1530 = vunpack.c.0.s8 %v1529
    %v1531 = vlaneseq
    %v1532 = vshrl.u32 %v1531, 7
    %v1533 = vsub.s32 %v1530, %v1532
    %v1534 = vrot.slane %v1526, %v1533
    %1536 = vset.pattern.permute.xlu0 0
    %1537 = vperm.xlu0 %1536, %v1305
    %v1538 = vpop.permute.xlu0 %1537
    %v1541 = vunpack.c.l.s4 839922192
    %v1542 = vunpack.c.0.s8 %v1541
    %v1543 = vlaneseq
    %v1544 = vshrl.u32 %v1543, 7
    %v1545 = vsub.s32 %v1542, %v1544
    %v1546 = vrot.slane %v1538, %v1545
    %1548 = vset.pattern.permute.xlu0 0
    %1549 = vperm.xlu0 %1548, %v1306
    %v1550 = vpop.permute.xlu0 %1549
    %v1553 = vunpack.c.l.s4 839922192
    %v1554 = vunpack.c.0.s8 %v1553
    %v1555 = vlaneseq
    %v1556 = vshrl.u32 %v1555, 7
    %v1557 = vsub.s32 %v1554, %v1556
    %v1558 = vrot.slane %v1550, %v1557
    %1560 = vset.pattern.permute.xlu0 0
    %1561 = vperm.xlu0 %1560, %v1307
    %v1562 = vpop.permute.xlu0 %1561
    %v1565 = vunpack.c.l.s4 839922192
    %v1566 = vunpack.c.0.s8 %v1565
    %v1567 = vlaneseq
    %v1568 = vshrl.u32 %v1567, 7
    %v1569 = vsub.s32 %v1566, %v1568
    %v1570 = vrot.slane %v1562, %v1569
    %1572 = vset.pattern.permute.xlu0 0
    %1573 = vperm.xlu0 %1572, %v1308
    %v1574 = vpop.permute.xlu0 %1573
    %v1577 = vunpack.c.l.s4 839922192
    %v1578 = vunpack.c.0.s8 %v1577
    %v1579 = vlaneseq
    %v1580 = vshrl.u32 %v1579, 7
    %v1581 = vsub.s32 %v1578, %v1580
    %v1582 = vrot.slane %v1574, %v1581
    %1584 = vset.pattern.permute.xlu0 0
    %1585 = vperm.xlu0 %1584, %v1309
    %v1586 = vpop.permute.xlu0 %1585
    %v1589 = vunpack.c.l.s4 839922192
    %v1590 = vunpack.c.0.s8 %v1589
    %v1591 = vlaneseq
    %v1592 = vshrl.u32 %v1591, 7
    %v1593 = vsub.s32 %v1590, %v1592
    %v1594 = vrot.slane %v1586, %v1593
    %1596 = vset.pattern.permute.xlu0 0
    %1597 = vperm.xlu0 %1596, %v1310
    %v1598 = vpop.permute.xlu0 %1597
    %v1601 = vunpack.c.l.s4 839922192
    %v1602 = vunpack.c.0.s8 %v1601
    %v1603 = vlaneseq
    %v1604 = vshrl.u32 %v1603, 7
    %v1605 = vsub.s32 %v1602, %v1604
    %v1606 = vrot.slane %v1598, %v1605
    %1608 = vset.pattern.permute.xlu0 0
    %1609 = vperm.xlu0 %1608, %v1311
    %v1610 = vpop.permute.xlu0 %1609
    %v1613 = vunpack.c.l.s4 839922192
    %v1614 = vunpack.c.0.s8 %v1613
    %v1615 = vlaneseq
    %v1616 = vshrl.u32 %v1615, 7
    %v1617 = vsub.s32 %v1614, %v1616
    %v1618 = vrot.slane %v1610, %v1617
    %1620 = vset.pattern.permute.xlu0 0
    %1621 = vperm.xlu0 %1620, %v1312
    %v1622 = vpop.permute.xlu0 %1621
    %v1625 = vunpack.c.l.s4 839922192
    %v1626 = vunpack.c.0.s8 %v1625
    %v1627 = vlaneseq
    %v1628 = vshrl.u32 %v1627, 7
    %v1629 = vsub.s32 %v1626, %v1628
    %v1630 = vrot.slane %v1622, %v1629
    %1632 = vset.pattern.permute.xlu0 0
    %1633 = vperm.xlu0 %1632, %v1313
    %v1634 = vpop.permute.xlu0 %1633
    %v1637 = vunpack.c.l.s4 839922192
    %v1638 = vunpack.c.0.s8 %v1637
    %v1639 = vlaneseq
    %v1640 = vshrl.u32 %v1639, 7
    %v1641 = vsub.s32 %v1638, %v1640
    %v1642 = vrot.slane %v1634, %v1641
    %1644 = vset.pattern.permute.xlu0 0
    %1645 = vperm.xlu0 %1644, %v1314
    %v1646 = vpop.permute.xlu0 %1645
    %v1649 = vunpack.c.l.s4 839922192
    %v1650 = vunpack.c.0.s8 %v1649
    %v1651 = vlaneseq
    %v1652 = vshrl.u32 %v1651, 7
    %v1653 = vsub.s32 %v1650, %v1652
    %v1654 = vrot.slane %v1646, %v1653
    %1656 = vset.pattern.permute.xlu0 0
    %1657 = vperm.xlu0 %1656, %v1315
    %v1658 = vpop.permute.xlu0 %1657
    %v1661 = vunpack.c.l.s4 839922192
    %v1662 = vunpack.c.0.s8 %v1661
    %v1663 = vlaneseq
    %v1664 = vshrl.u32 %v1663, 7
    %v1665 = vsub.s32 %v1662, %v1664
    %v1666 = vrot.slane %v1658, %v1665
    %1668 = vset.pattern.permute.xlu0 0
    %1669 = vperm.xlu0 %1668, %v1316
    %v1670 = vpop.permute.xlu0 %1669
    %v1673 = vunpack.c.l.s4 839922192
    %v1674 = vunpack.c.0.s8 %v1673
    %v1675 = vlaneseq
    %v1676 = vshrl.u32 %v1675, 7
    %v1677 = vsub.s32 %v1674, %v1676
    %v1678 = vrot.slane %v1670, %v1677
    %1680 = vset.pattern.permute.xlu0 0
    %1681 = vperm.xlu0 %1680, %v1317
    %v1682 = vpop.permute.xlu0 %1681
    %v1685 = vunpack.c.l.s4 839922192
    %v1686 = vunpack.c.0.s8 %v1685
    %v1687 = vlaneseq
    %v1688 = vshrl.u32 %v1687, 7
    %v1689 = vsub.s32 %v1686, %v1688
    %v1690 = vrot.slane %v1682, %v1689
    %1692 = vset.pattern.permute.xlu0 0
    %1693 = vperm.xlu0 %1692, %v1318
    %v1694 = vpop.permute.xlu0 %1693
    %v1697 = vunpack.c.l.s4 839922192
    %v1698 = vunpack.c.0.s8 %v1697
    %v1699 = vlaneseq
    %v1700 = vshrl.u32 %v1699, 7
    %v1701 = vsub.s32 %v1698, %v1700
    %v1702 = vrot.slane %v1694, %v1701
    %v1735 = vunpack.c.l.b16 %v1330
    %v1736 = vunpack.c.l.b16 %v1342
    %v1737 = vunpack.c.l.b16 %v1354
    %v1738 = vunpack.c.l.b16 %v1366
    %v1739 = vunpack.c.l.b16 %v1378
    %v1740 = vunpack.c.l.b16 %v1390
    %v1741 = vunpack.c.l.b16 %v1402
    %v1742 = vunpack.c.l.b16 %v1414
    %v1743 = vunpack.c.l.b16 %v1426
    %v1744 = vunpack.c.l.b16 %v1438
    %v1745 = vunpack.c.l.b16 %v1450
    %v1746 = vunpack.c.l.b16 %v1462
    %v1747 = vunpack.c.l.b16 %v1474
    %v1748 = vunpack.c.l.b16 %v1486
    %v1749 = vunpack.c.l.b16 %v1498
    %v1750 = vunpack.c.l.b16 %v1510
    %v1751 = vunpack.c.l.b16 %v1522
    %v1752 = vunpack.c.l.b16 %v1534
    %v1753 = vunpack.c.l.b16 %v1546
    %v1754 = vunpack.c.l.b16 %v1558
    %v1755 = vunpack.c.l.b16 %v1570
    %v1756 = vunpack.c.l.b16 %v1582
    %v1757 = vunpack.c.l.b16 %v1594
    %v1758 = vunpack.c.l.b16 %v1606
    %v1759 = vunpack.c.l.b16 %v1618
    %v1760 = vunpack.c.l.b16 %v1630
    %v1761 = vunpack.c.l.b16 %v1642
    %v1762 = vunpack.c.l.b16 %v1654
    %v1763 = vunpack.c.l.b16 %v1666
    %v1764 = vunpack.c.l.b16 %v1678
    %v1765 = vunpack.c.l.b16 %v1690
    %v1766 = vunpack.c.l.b16 %v1702
    %v1767 = vpack.c.b16 %v1736, %v1735
    %v1768 = vpack.c.b16 %v1738, %v1737
    %v1769 = vpack.c.b16 %v1740, %v1739
    %v1770 = vpack.c.b16 %v1742, %v1741
    %v1771 = vpack.c.b16 %v1744, %v1743
    %v1772 = vpack.c.b16 %v1746, %v1745
    %v1773 = vpack.c.b16 %v1748, %v1747
    %v1774 = vpack.c.b16 %v1750, %v1749
    %v1775 = vpack.c.b16 %v1752, %v1751
    %v1776 = vpack.c.b16 %v1754, %v1753
    %v1777 = vpack.c.b16 %v1756, %v1755
    %v1778 = vpack.c.b16 %v1758, %v1757
    %v1779 = vpack.c.b16 %v1760, %v1759
    %v1780 = vpack.c.b16 %v1762, %v1761
    %v1781 = vpack.c.b16 %v1764, %v1763
    %v1782 = vpack.c.b16 %v1766, %v1765
    %v1799 = vadd.bf16 %v1271, %v1767
    %v1800 = vadd.bf16 %v1272, %v1768
    %v1801 = vadd.bf16 %v1273, %v1769
    %v1802 = vadd.bf16 %v1274, %v1770
    %v1803 = vadd.bf16 %v1275, %v1771
    %v1804 = vadd.bf16 %v1276, %v1772
    %v1805 = vadd.bf16 %v1277, %v1773
    %v1806 = vadd.bf16 %v1278, %v1774
    %v1807 = vadd.bf16 %v1279, %v1775
    %v1808 = vadd.bf16 %v1280, %v1776
    %v1809 = vadd.bf16 %v1281, %v1777
    %v1810 = vadd.bf16 %v1282, %v1778
    %v1811 = vadd.bf16 %v1283, %v1779
    %v1812 = vadd.bf16 %v1284, %v1780
    %v1813 = vadd.bf16 %v1285, %v1781
    %v1814 = vadd.bf16 %v1286, %v1782
    %v1815 = vmax.bf16 %v1799, 0
    %v1816 = vmax.bf16 %v1800, 0
    %v1817 = vmax.bf16 %v1801, 0
    %v1818 = vmax.bf16 %v1802, 0
    %v1819 = vmax.bf16 %v1803, 0
    %v1820 = vmax.bf16 %v1804, 0
    %v1821 = vmax.bf16 %v1805, 0
    %v1822 = vmax.bf16 %v1806, 0
    %v1823 = vmax.bf16 %v1807, 0
    %v1824 = vmax.bf16 %v1808, 0
    %v1825 = vmax.bf16 %v1809, 0
    %v1826 = vmax.bf16 %v1810, 0
    %v1827 = vmax.bf16 %v1811, 0
    %v1828 = vmax.bf16 %v1812, 0
    %v1829 = vmax.bf16 %v1813, 0
    %v1830 = vmax.bf16 %v1814, 0
    %v1831 = vld [vmem:[%s5] sm:$0xff]
    %v1832 = vld [vmem:[%s6] sm:$0xff]
    %1834 = vset.pattern.permute.xlu0 0
    %1835 = vperm.xlu0 %1834, %v1832
    %v1836 = vpop.permute.xlu0 %1835
    %v1839 = vunpack.c.l.b16 %v1831
    %v1840 = vunpack.c.h.b16 %v1831
    %v1841 = vpack.c.b16 %v1839, %v1839
    %v1842 = vpack.c.b16 %v1840, %v1840
    %1845 = vmatprep.subr.bf16.mxu0 0
    %1846 = vmatpush1.bf16.msra.mxu0 %v1815
    %1847 = vmatprep.subr.bf16.mxu0 0
    %1848 = vmatpush1.bf16.msra.mxu0 %v1816
    %1849 = vmatprep.subr.bf16.mxu0 0
    %1850 = vmatpush1.bf16.msra.mxu0 %v1817
    %1851 = vmatprep.subr.bf16.mxu0 0
    %1852 = vmatpush1.bf16.msra.mxu0 %v1818
    %1853 = vmatprep.subr.bf16.mxu0 0
    %1854 = vmatpush1.bf16.msra.mxu0 %v1819
    %1855 = vmatprep.subr.bf16.mxu0 0
    %1856 = vmatpush1.bf16.msra.mxu0 %v1820
    %1857 = vmatprep.subr.bf16.mxu0 0
    %1858 = vmatpush1.bf16.msra.mxu0 %v1821
    %1859 = vmatprep.subr.bf16.mxu0 0
    %1860 = vmatpush1.bf16.msra.mxu0 %v1822
    %1861 = vmatprep.subr.bf16.mxu0 0
    %1862 = vmatpush1.bf16.msra.mxu0 %v1823
    %1863 = vmatprep.subr.bf16.mxu0 0
    %1864 = vmatpush1.bf16.msra.mxu0 %v1824
    %1865 = vmatprep.subr.bf16.mxu0 0
    %1866 = vmatpush1.bf16.msra.mxu0 %v1825
    %1867 = vmatprep.subr.bf16.mxu0 0
    %1868 = vmatpush1.bf16.msra.mxu0 %v1826
    %1869 = vmatprep.subr.bf16.mxu0 0
    %1870 = vmatpush1.bf16.msra.mxu0 %v1827
    %1871 = vmatprep.subr.bf16.mxu0 0
    %1872 = vmatpush1.bf16.msra.mxu0 %v1828
    %1873 = vmatprep.subr.bf16.mxu0 0
    %1874 = vmatpush1.bf16.msra.mxu0 %v1829
    %1875 = vmatprep.subr.bf16.mxu0 0
    %1876 = vmatpush1.bf16.msra.mxu0 %v1830
    %1877 = vmatprep.mubr.bf16.mxu0 %v1842
    %1878 = vmatmul.mubr.bf16.gmra.mrb[0].mxu0 %v1841
    %v1879 = vpop.f32.mrb[0].mxu0
    %v1880 = vadd.f32 %v1836, %v1879
    %v1881 = vpop.f32.mrb[0].mxu0
    %v1882 = vpop.f32.mrb[0].mxu0
    %v1883 = vpop.f32.mrb[0].mxu0
    %1884 = vdwg.mxu0
    %v1885 = vtanh.pop %v1880
    %vm1886 = vcmask 64512
    %1887 = vst.msk [vmem:[#allocation2] sm:$0xff] %vm1886, %v1885
    // Predicated region
    $region30: #{tpu_custom_call.1} parent=1 // pred_check
      _
    $region31: #{tpu_custom_call.1} parent=1 // pred_check_branch
      %1889 = sbr.rel (0) target = $region33
    $region32: #{tpu_custom_call.1} parent=1 // pred_region
      %s1891 = ssub.s32 128, 128
      %1892 = vsyncadd [#allocation3], %s1891
      %s1894 = sshll.u32 [#allocation2], 4
      %s1895 = int_to_ptr.vmem [resolvable:$true] %s1894
      %1897 = dma.vmem_to_hbm [thread:$0]  %s1895, 128, %s7, [#allocation3]
    $region33: #{tpu_custom_call.1} parent=1 // pred_fallthru
      _
    // Predicated region
    $region34: #{tpu_custom_call.1} parent=1 // pred_check
      _
    $region35: #{tpu_custom_call.1} parent=1 // pred_check_branch
      %1899 = sbr.rel (0) target = $region37
    $region36: #{tpu_custom_call.1} parent=1 // pred_region
      %1900 = dma.done [#allocation3], 128
    $region37: #{tpu_custom_call.1} parent=1 // pred_fallthru
      _
    %1901 = vsyncpa [#allocation3], 1

</llo_original>
